<compile_context>
chip_gen: v7x
topology: tpu7x:2x2x1
jax: 0.10.0
libtpu: 0.0.40
codegen_flags: <defaults>
</compile_context>

<pallas_src>
import functools

import jax
import jax.numpy as jnp
from jax.experimental import pallas as pl
from jax.experimental.pallas import tpu as pltpu

BN_EPS = 1e-5
_NEG_BIG = -1e30  # finite "-inf" for masking padded logit lanes


# --------------------------------------------------------------------------
# Fused kernel: all layers in one body, activation stays on-chip (VMEM/vregs).
# --------------------------------------------------------------------------
def _fused_mlp_kernel(x_ref, w_ref, b_ref, o_ref, *, layer_dims, out_channels):
    num_layers = len(layer_dims)
    h = x_ref[...]                                   # [tm, c_in_pad] bf16
    for li, (k_dim, n_dim) in enumerate(layer_dims):  # static, unrolled
        w = w_ref[li, :k_dim, :n_dim]                # static lane/sublane-aligned slice
        # MXU matmul, bf16 operands, f32 accumulation.
        y = jnp.dot(h, w, preferred_element_type=jnp.float32)
        y = y + b_ref[li, :, :n_dim]                 # f32 bias (BN already folded in)
        if li < num_layers - 1:
            # ReLU, then keep the inter-layer activation in bf16 (MXU operand dtype).
            h = jnp.maximum(y, 0.0).astype(jnp.bfloat16)
            # TODO(synk): F.dropout(training=True) stochastic masking omitted;
            # eval-mode dropout is the identity (semantics reproduced here).
        else:
            # Final layer: mask padded logit lanes, numerically-stable log_softmax.
            # Epilogue only spans the narrowed d_out_pad lane block.
            col = jax.lax.broadcasted_iota(jnp.int32, y.shape, 1)
            y = jnp.where(col < out_channels, y, _NEG_BIG)
            m = jnp.max(y, axis=-1, keepdims=True)
            s = y - m
            lse = jnp.log(jnp.sum(jnp.exp(s), axis=-1, keepdims=True))
            o_ref[...] = s - lse


# --------------------------------------------------------------------------
# Wrapper-side parameter transform: fold BN, pad each dim to a 128 multiple,
# stack into one [L, d_pad, d_pad] weight tensor + [L, 1, d_pad] bias tensor.
# --------------------------------------------------------------------------
def _round_up(x, m):
    return ((x + m - 1) // m) * m


def fold_bn_and_pack(hidden_params, final_params, use_bf16=True):
    """Fold BN(eval) into Linear weights (f32), pad dims to 128 multiples and
    stack.  Returns (w_stack[L,d_pad,d_pad], b_stack[L,1,d_pad], layer_dims)
    where layer_dims[li] = (padded K, padded N) for layer li."""
    wl, bl = final_params
    layer_in = [w.shape[0] for (w, *_r) in hidden_params] + [wl.shape[0]]
    layer_out = [w.shape[1] for (w, *_r) in hidden_params] + [wl.shape[1]]
    layer_dims = tuple((_round_up(ci, 128), _round_up(co, 128))
                       for ci, co in zip(layer_in, layer_out))
    d_pad = max(max(k for k, _ in layer_dims), max(n for _, n in layer_dims))

    num_layers = len(layer_dims)
    w_stack = jnp.zeros((num_layers, d_pad, d_pad), jnp.float32)
    b_stack = jnp.zeros((num_layers, 1, d_pad), jnp.float32)

    for li, (w, b, gamma, beta, mean, var) in enumerate(hidden_params):
        inv = gamma * jax.lax.rsqrt(var + BN_EPS)          # BN(eval) fold, f32
        w_f = w * inv                                      # [c_in, c_out]
        b_f = (b - mean) * inv + beta                      # [1, c_out]
        w_stack = w_stack.at[li, :w.shape[0], :w.shape[1]].set(w_f)
        b_stack = b_stack.at[li, :, :w.shape[1]].set(b_f)

    w_stack = w_stack.at[num_layers - 1, :wl.shape[0], :wl.shape[1]].set(wl)
    b_stack = b_stack.at[num_layers - 1, :, :wl.shape[1]].set(bl)

    if use_bf16:
        w_stack = w_stack.astype(jnp.bfloat16)             # MXU operands in bf16
    return w_stack, b_stack, layer_dims


# --------------------------------------------------------------------------
# VMEM sizing (generation-aware) and row-tile choice.
# --------------------------------------------------------------------------
def _vmem_capacity():
    try:
        return int(pltpu.get_tpu_info().vmem_capacity_bytes)
    except Exception:
        return 64 << 20          # conservative default (v7x has the smallest VMEM)


def _vmem_budget():
    return (_vmem_capacity() * 3) // 4   # ~96 MiB on v5e/v6e, ~48 MiB on v7x


def _tile_bytes(tm, c_in_pad, d_hid_pad, d_out_pad):
    in_bytes = 2 * tm * c_in_pad * 2                 # bf16 x tile, double-buffered
    out_bytes = 2 * tm * d_out_pad * 4               # f32 out tile, double-buffered
    # in-kernel intermediates: f32 y + bf16 h + epilogue temporaries
    inter = tm * max(d_hid_pad, d_out_pad) * (4 + 2 + 4)
    return in_bytes + out_bytes + inter


def _choose_row_tile(n_rows, c_in_pad, d_hid_pad, d_out_pad, w_bytes, budget):
    n_cap = _round_up(max(n_rows, 8), 8)
    tm = 8
    for cand in (2048, 1024, 512, 256, 128, 64, 32, 16, 8):
        if cand > n_cap and cand > 8:
            continue                                  # don't over-pad tiny batches
        if _tile_bytes(cand, c_in_pad, d_hid_pad, d_out_pad) + w_bytes <= budget:
            tm = cand
            break
    # Megacore (v7x): split into >=2 grid steps only if each half still keeps
    # the MXU busy (>=256 rows); never shrink small tiles just to make 2 steps.
    if tm >= 512 and _round_up(n_rows, tm) // tm == 1:
        tm //= 2
    return tm


def _resident_spec(shape, single_buffer):
    """BlockSpec for a grid-invariant (resident) operand; single-buffer if possible."""
    index_map = lambda i: (0,) * len(shape)
    if single_buffer and hasattr(pl, "Buffered"):
        return pl.BlockSpec(shape, index_map, pipeline_mode=pl.Buffered(1))
    return pl.BlockSpec(shape, index_map)


# --------------------------------------------------------------------------
# Forward pass
# --------------------------------------------------------------------------
def mlp_forward(x, w_stack, b_stack, layer_dims, out_channels, *,
                single_buffer_weights=True):
    """x: [N, C_in] f32; returns [N, out_channels] f32 log-probabilities."""
    n, c_in = x.shape
    num_layers, d_pad, _ = w_stack.shape
    c_in_pad = layer_dims[0][0]
    d_out_pad = layer_dims[-1][1]
    d_hid_pad = max(nn for _, nn in layer_dims)

    w_factor = 1 if single_buffer_weights else 2
    w_bytes = w_factor * (w_stack.size * w_stack.dtype.itemsize
                          + b_stack.size * b_stack.dtype.itemsize)

    budget = _vmem_budget()
    tm = _choose_row_tile(n, c_in_pad, d_hid_pad, d_out_pad, w_bytes, budget)
    n_pad = _round_up(n, tm)

    # Stream x as bf16, padded only to round_up(c_in, 128) lanes (not d_pad).
    x_pad = jnp.zeros((n_pad, c_in_pad), jnp.bfloat16)
    x_pad = x_pad.at[:n, :c_in].set(x.astype(jnp.bfloat16))

    needed = _tile_bytes(tm, c_in_pad, d_hid_pad, d_out_pad) + w_bytes
    vmem_limit = None
    if needed > (16 << 20):
        vmem_limit = min(needed + (8 << 20), (_vmem_capacity() * 9) // 10)

    kernel = functools.partial(_fused_mlp_kernel,
                               layer_dims=tuple(layer_dims),
                               out_channels=out_channels)

    out = pl.pallas_call(
        kernel,
        out_shape=jax.ShapeDtypeStruct((n_pad, d_out_pad), jnp.float32),
        grid=(n_pad // tm,),
        in_specs=[
            pl.BlockSpec((tm, c_in_pad), lambda i: (i, 0)),            # activations
            _resident_spec((num_layers, d_pad, d_pad), single_buffer_weights),  # W'
            _resident_spec((num_layers, 1, d_pad), single_buffer_weights),      # b'
        ],
        out_specs=pl.BlockSpec((tm, d_out_pad), lambda i: (i, 0)),     # narrow, lane-dense
        compiler_params=pltpu.CompilerParams(
            dimension_semantics=("parallel",),
            vmem_limit_bytes=vmem_limit),
    )(x_pad, w_stack, b_stack)

    return out[:n, :out_channels]


# --------------------------------------------------------------------------
# Deterministic parameter construction (shapes per MLP.__init__)
# --------------------------------------------------------------------------
def make_params(key, in_channels, hidden_channels, out_channels, num_layers):
    dims = [in_channels] + [hidden_channels] * (num_layers - 1) + [out_channels]
    hidden_params = []
    for li in range(num_layers - 1):
        c_in, c_out = dims[li], dims[li + 1]
        key, kw, kb, km = jax.random.split(key, 4)
        bound = 1.0 / jnp.sqrt(c_in)
        w = jax.random.uniform(kw, (c_in, c_out), jnp.float32, -bound, bound)
        b = jax.random.uniform(kb, (1, c_out), jnp.float32, -bound, bound)
        gamma = jnp.ones((1, c_out), jnp.float32)
        beta = jnp.zeros((1, c_out), jnp.float32)
        mean = 0.1 * jax.random.normal(km, (1, c_out), jnp.float32)
        var = jnp.ones((1, c_out), jnp.float32) * 1.5
        hidden_params.append((w, b, gamma, beta, mean, var))
    c_in, c_out = dims[-2], dims[-1]
    key, kw, kb = jax.random.split(key, 3)
    bound = 1.0 / jnp.sqrt(c_in)
    wf = jax.random.uniform(kw, (c_in, c_out), jnp.float32, -bound, bound)
    bf = jax.random.uniform(kb, (1, c_out), jnp.float32, -bound, bound)
    return hidden_params, (wf, bf)


# --------------------------------------------------------------------------
# References
# --------------------------------------------------------------------------
def _reference_matched(x, w_stack, b_stack, layer_dims, out_channels):
    """Mirrors the kernel math exactly (folded/padded params, bf16 operands)."""
    n, c_in = x.shape
    c_in_pad = layer_dims[0][0]
    num_layers = len(layer_dims)
    h = jnp.zeros((n, c_in_pad), jnp.bfloat16).at[:, :c_in].set(x.astype(jnp.bfloat16))
    out = None
    for li, (k_dim, n_dim) in enumerate(layer_dims):
        y = jnp.dot(h, w_stack[li, :k_dim, :n_dim],
                    preferred_element_type=jnp.float32) + b_stack[li, :, :n_dim]
        if li < num_layers - 1:
            h = jnp.maximum(y, 0.0).astype(jnp.bfloat16)
        else:
            col = jnp.arange(n_dim)[None, :]
            y = jnp.where(col < out_channels, y, _NEG_BIG)
            m = jnp.max(y, axis=-1, keepdims=True)
            s = y - m
            out = s - jnp.log(jnp.sum(jnp.exp(s), axis=-1, keepdims=True))
    return out[:, :out_channels]


def _reference_f32(x, hidden_params, final_params):
    """Original PyTorch-module semantics (eval mode), pure f32, unfused."""
    h = x
    for (w, b, gamma, beta, mean, var) in hidden_params:
        h = h @ w + b
        h = (h - mean) * jax.lax.rsqrt(var + BN_EPS) * gamma + beta
        h = jnp.maximum(h, 0.0)
    w, b = final_params
    return jax.nn.log_softmax(h @ w + b, axis=-1)


# --------------------------------------------------------------------------
if __name__ == "__main__":
    key = jax.random.PRNGKey(0)
    N, IN_C, HID_C, OUT_C, NUM_LAYERS = 128, 32, 32, 16, 3

    key, kx, kp = jax.random.split(key, 3)
    x = jax.random.normal(kx, (N, IN_C), jnp.float32)
    hidden_params, final_params = make_params(kp, IN_C, HID_C, OUT_C, NUM_LAYERS)

    w_stack, b_stack, layer_dims = fold_bn_and_pack(hidden_params, final_params,
                                                    use_bf16=True)

    # Prefer single-buffered resident weights; fall back to the default
    # double-buffered pipeline if this JAX version rejects pipeline_mode/Buffered(1).
    try:
        out = jax.block_until_ready(
            mlp_forward(x, w_stack, b_stack, layer_dims, OUT_C,
                        single_buffer_weights=True))
    except Exception:
        out = jax.block_until_ready(
            mlp_forward(x, w_stack, b_stack, layer_dims, OUT_C,
                        single_buffer_weights=False))

    assert out.shape == (N, OUT_C)

    # 1) strict check vs. a reference that mirrors the kernel math exactly
    ref_m = _reference_matched(x, w_stack, b_stack, layer_dims, OUT_C)
    assert jnp.allclose(out, ref_m, atol=1e-3, rtol=1e-3), \
        float(jnp.max(jnp.abs(out - ref_m)))

    # 2) loose check vs. original f32 module semantics (bf16 precision contract)
    ref_f = _reference_f32(x, hidden_params, final_params)
    assert jnp.allclose(out, ref_f, atol=1e-1, rtol=1e-1), \
        float(jnp.max(jnp.abs(out - ref_f)))

    print("KERNEL_OK")
</pallas_src>

<mosaic_0001>
module attributes {stable_mosaic.version = 11 : i64} {
  func.func @_fused_mlp_kernel(%arg0: i32, %arg1: memref<128x128xbf16, #tpu.memory_space<vmem>>, %arg2: memref<3x128x128xbf16, #tpu.memory_space<vmem>>, %arg3: memref<3x1x128xf32, #tpu.memory_space<vmem>>, %arg4: memref<128x128xf32, #tpu.memory_space<vmem>>) attributes {dimension_semantics = [#tpu.dimension_semantics<parallel>], iteration_bounds = array<i64: 1>, scalar_prefetch = 0 : i64, scratch_operands = 0 : i64, tpu.core_type = #tpu.core_type<tc>, window_params = [{transform_indices = @transform_0, window_bounds = array<i64: 128, 128>}, {pipeline_mode = #tpu.pipeline_mode<synchronous>, transform_indices = @transform_1, window_bounds = array<i64: 3, 128, 128>}, {pipeline_mode = #tpu.pipeline_mode<synchronous>, transform_indices = @transform_2, window_bounds = array<i64: 3, 1, 128>}, {transform_indices = @transform_3, window_bounds = array<i64: 128, 128>}]} {
    %c0 = arith.constant 0 : index
    %c0_0 = arith.constant 0 : index
    %0 = vector.load %arg1[%c0, %c0_0] : memref<128x128xbf16, #tpu.memory_space<vmem>>, vector<128x128xbf16>
    %c0_1 = arith.constant 0 : index
    %c0_2 = arith.constant 0 : index
    %c0_3 = arith.constant 0 : index
    %1 = vector.load %arg2[%c0_1, %c0_2, %c0_3] : memref<3x128x128xbf16, #tpu.memory_space<vmem>>, vector<1x128x128xbf16>
    %2 = vector.shape_cast %1 : vector<1x128x128xbf16> to vector<128x128xbf16>
    %cst = arith.constant dense<0.000000e+00> : vector<128x128xf32>
    %3 = tpu.matmul %0, %2, %cst {dimension_numbers = #tpu.dot_dimension_numbers<[1], [0], [0], [1], [0, 0, 1, 1], [], []>} : vector<128x128xbf16>, vector<128x128xbf16>, vector<128x128xf32> -> vector<128x128xf32>
    %c0_4 = arith.constant 0 : index
    %c0_5 = arith.constant 0 : index
    %c0_6 = arith.constant 0 : index
    %4 = vector.load %arg3[%c0_4, %c0_5, %c0_6] : memref<3x1x128xf32, #tpu.memory_space<vmem>>, vector<1x1x128xf32>
    %5 = vector.shape_cast %4 : vector<1x1x128xf32> to vector<1x128xf32>
    %6 = vector.broadcast %5 : vector<1x128xf32> to vector<128x128xf32>
    %7 = arith.addf %3, %6 : vector<128x128xf32>
    %cst_7 = arith.constant 0.000000e+00 : f32
    %8 = vector.broadcast %cst_7 : f32 to vector<128x128xf32>
    %9 = arith.maximumf %7, %8 : vector<128x128xf32>
    %10 = arith.truncf %9 : vector<128x128xf32> to vector<128x128xbf16>
    %c1 = arith.constant 1 : index
    %c0_8 = arith.constant 0 : index
    %c0_9 = arith.constant 0 : index
    %11 = vector.load %arg2[%c1, %c0_8, %c0_9] : memref<3x128x128xbf16, #tpu.memory_space<vmem>>, vector<1x128x128xbf16>
    %12 = vector.shape_cast %11 : vector<1x128x128xbf16> to vector<128x128xbf16>
    %cst_10 = arith.constant dense<0.000000e+00> : vector<128x128xf32>
    %13 = tpu.matmul %10, %12, %cst_10 {dimension_numbers = #tpu.dot_dimension_numbers<[1], [0], [0], [1], [0, 0, 1, 1], [], []>} : vector<128x128xbf16>, vector<128x128xbf16>, vector<128x128xf32> -> vector<128x128xf32>
    %c1_11 = arith.constant 1 : index
    %c0_12 = arith.constant 0 : index
    %c0_13 = arith.constant 0 : index
    %14 = vector.load %arg3[%c1_11, %c0_12, %c0_13] : memref<3x1x128xf32, #tpu.memory_space<vmem>>, vector<1x1x128xf32>
    %15 = vector.shape_cast %14 : vector<1x1x128xf32> to vector<1x128xf32>
    %16 = vector.broadcast %15 : vector<1x128xf32> to vector<128x128xf32>
    %17 = arith.addf %13, %16 : vector<128x128xf32>
    %cst_14 = arith.constant 0.000000e+00 : f32
    %18 = vector.broadcast %cst_14 : f32 to vector<128x128xf32>
    %19 = arith.maximumf %17, %18 : vector<128x128xf32>
    %20 = arith.truncf %19 : vector<128x128xf32> to vector<128x128xbf16>
    %c2 = arith.constant 2 : index
    %c0_15 = arith.constant 0 : index
    %c0_16 = arith.constant 0 : index
    %21 = vector.load %arg2[%c2, %c0_15, %c0_16] : memref<3x128x128xbf16, #tpu.memory_space<vmem>>, vector<1x128x128xbf16>
    %22 = vector.shape_cast %21 : vector<1x128x128xbf16> to vector<128x128xbf16>
    %cst_17 = arith.constant dense<0.000000e+00> : vector<128x128xf32>
    %23 = tpu.matmul %20, %22, %cst_17 {dimension_numbers = #tpu.dot_dimension_numbers<[1], [0], [0], [1], [0, 0, 1, 1], [], []>} : vector<128x128xbf16>, vector<128x128xbf16>, vector<128x128xf32> -> vector<128x128xf32>
    %c2_18 = arith.constant 2 : index
    %c0_19 = arith.constant 0 : index
    %c0_20 = arith.constant 0 : index
    %24 = vector.load %arg3[%c2_18, %c0_19, %c0_20] : memref<3x1x128xf32, #tpu.memory_space<vmem>>, vector<1x1x128xf32>
    %25 = vector.shape_cast %24 : vector<1x1x128xf32> to vector<1x128xf32>
    %26 = vector.broadcast %25 : vector<1x128xf32> to vector<128x128xf32>
    %27 = arith.addf %23, %26 : vector<128x128xf32>
    %28 = tpu.iota {dimensions = array<i32: 1>} : vector<128x128xi32>
    %c16_i32 = arith.constant 16 : i32
    %29 = vector.broadcast %c16_i32 : i32 to vector<128x128xi32>
    %30 = arith.cmpi slt, %28, %29 : vector<128x128xi32>
    %cst_21 = arith.constant -1.000000e+30 : f32
    %31 = vector.broadcast %cst_21 : f32 to vector<128x128xf32>
    %32 = arith.select %30, %27, %31 : vector<128x128xi1>, vector<128x128xf32>
    %cst_22 = arith.constant dense<0xFF800000> : vector<128xf32>
    %33 = vector.multi_reduction <maximumf>, %32, %cst_22 [1] : vector<128x128xf32> to vector<128xf32>
    %34 = vector.shape_cast %33 : vector<128xf32> to vector<128x1xf32>
    %35 = vector.broadcast %34 : vector<128x1xf32> to vector<128x128xf32>
    %36 = arith.subf %32, %35 : vector<128x128xf32>
    %37 = math.exp %36 : vector<128x128xf32>
    %cst_23 = arith.constant dense<0.000000e+00> : vector<128xf32>
    %38 = vector.multi_reduction <add>, %37, %cst_23 [1] : vector<128x128xf32> to vector<128xf32>
    %39 = vector.shape_cast %38 : vector<128xf32> to vector<128x1xf32>
    %40 = math.log %39 : vector<128x1xf32>
    %41 = vector.broadcast %40 : vector<128x1xf32> to vector<128x128xf32>
    %42 = arith.subf %36, %41 : vector<128x128xf32>
    %c0_24 = arith.constant 0 : index
    %c0_25 = arith.constant 0 : index
    %43 = vector.load %arg4[%c0_24, %c0_25] : memref<128x128xf32, #tpu.memory_space<vmem>>, vector<128x128xf32>
    tpu.vector_store %arg4[%c0_24, %c0_25], %42 {strides = array<i32>} : memref<128x128xf32, #tpu.memory_space<vmem>>, vector<128x128xf32>,
    return
  }
  func.func @transform_0(%arg0: i32) -> (i32, i32) {
    %c0_i32 = arith.constant 0 : i32
    %c0_i32_0 = arith.constant 0 : i32
    return %arg0, %c0_i32 : i32, i32
  }
  func.func @transform_1(%arg0: i32) -> (i32, i32, i32) {
    %c0_i32 = arith.constant 0 : i32
    %c0_i32_0 = arith.constant 0 : i32
    %c0_i32_1 = arith.constant 0 : i32
    %c0_i32_2 = arith.constant 0 : i32
    return %c0_i32, %c0_i32_0, %c0_i32_1 : i32, i32, i32
  }
  func.func @transform_2(%arg0: i32) -> (i32, i32, i32) {
    %c0_i32 = arith.constant 0 : i32
    %c0_i32_0 = arith.constant 0 : i32
    %c0_i32_1 = arith.constant 0 : i32
    %c0_i32_2 = arith.constant 0 : i32
    return %c0_i32, %c0_i32_0, %c0_i32_1 : i32, i32, i32
  }
  func.func @transform_3(%arg0: i32) -> (i32, i32) {
    %c0_i32 = arith.constant 0 : i32
    %c0_i32_0 = arith.constant 0 : i32
    return %arg0, %c0_i32 : i32, i32
  }
}

module attributes {stable_mosaic.version = 11 : i64} {
  func.func @_fused_mlp_kernel(%arg0: i32, %arg1: memref<128x128xbf16, #tpu.memory_space<vmem>>, %arg2: memref<3x128x128xbf16, #tpu.memory_space<vmem>>, %arg3: memref<3x1x128xf32, #tpu.memory_space<vmem>>, %arg4: memref<128x128xf32, #tpu.memory_space<vmem>>) attributes {dimension_semantics = [#tpu.dimension_semantics<parallel>], iteration_bounds = array<i64: 1>, scalar_prefetch = 0 : i64, scratch_operands = 0 : i64, tpu.core_type = #tpu.core_type<tc>, window_params = [{transform_indices = @transform_0, window_bounds = array<i64: 128, 128>}, {pipeline_mode = #tpu.pipeline_mode<synchronous>, transform_indices = @transform_1, window_bounds = array<i64: 3, 128, 128>}, {pipeline_mode = #tpu.pipeline_mode<synchronous>, transform_indices = @transform_2, window_bounds = array<i64: 3, 1, 128>}, {transform_indices = @transform_3, window_bounds = array<i64: 128, 128>}]} {
    %c0 = arith.constant 0 : index
    %c0_0 = arith.constant 0 : index
    %0 = vector.load %arg1[%c0, %c0_0] : memref<128x128xbf16, #tpu.memory_space<vmem>>, vector<128x128xbf16>
    %c0_1 = arith.constant 0 : index
    %c0_2 = arith.constant 0 : index
    %c0_3 = arith.constant 0 : index
    %1 = vector.load %arg2[%c0_1, %c0_2, %c0_3] : memref<3x128x128xbf16, #tpu.memory_space<vmem>>, vector<1x128x128xbf16>
    %2 = vector.shape_cast %1 : vector<1x128x128xbf16> to vector<128x128xbf16>
    %cst = arith.constant dense<0.000000e+00> : vector<128x128xf32>
    %3 = tpu.matmul %0, %2, %cst {dimension_numbers = #tpu.dot_dimension_numbers<[1], [0], [0], [1], [0, 0, 1, 1], [], []>} : vector<128x128xbf16>, vector<128x128xbf16>, vector<128x128xf32> -> vector<128x128xf32>
    %c0_4 = arith.constant 0 : index
    %c0_5 = arith.constant 0 : index
    %c0_6 = arith.constant 0 : index
    %4 = vector.load %arg3[%c0_4, %c0_5, %c0_6] : memref<3x1x128xf32, #tpu.memory_space<vmem>>, vector<1x1x128xf32>
    %5 = vector.shape_cast %4 : vector<1x1x128xf32> to vector<1x128xf32>
    %6 = vector.broadcast %5 : vector<1x128xf32> to vector<128x128xf32>
    %7 = arith.addf %3, %6 : vector<128x128xf32>
    %cst_7 = arith.constant 0.000000e+00 : f32
    %8 = vector.broadcast %cst_7 : f32 to vector<128x128xf32>
    %9 = arith.maximumf %7, %8 : vector<128x128xf32>
    %10 = arith.truncf %9 : vector<128x128xf32> to vector<128x128xbf16>
    %c1 = arith.constant 1 : index
    %c0_8 = arith.constant 0 : index
    %c0_9 = arith.constant 0 : index
    %11 = vector.load %arg2[%c1, %c0_8, %c0_9] : memref<3x128x128xbf16, #tpu.memory_space<vmem>>, vector<1x128x128xbf16>
    %12 = vector.shape_cast %11 : vector<1x128x128xbf16> to vector<128x128xbf16>
    %cst_10 = arith.constant dense<0.000000e+00> : vector<128x128xf32>
    %13 = tpu.matmul %10, %12, %cst_10 {dimension_numbers = #tpu.dot_dimension_numbers<[1], [0], [0], [1], [0, 0, 1, 1], [], []>} : vector<128x128xbf16>, vector<128x128xbf16>, vector<128x128xf32> -> vector<128x128xf32>
    %c1_11 = arith.constant 1 : index
    %c0_12 = arith.constant 0 : index
    %c0_13 = arith.constant 0 : index
    %14 = vector.load %arg3[%c1_11, %c0_12, %c0_13] : memref<3x1x128xf32, #tpu.memory_space<vmem>>, vector<1x1x128xf32>
    %15 = vector.shape_cast %14 : vector<1x1x128xf32> to vector<1x128xf32>
    %16 = vector.broadcast %15 : vector<1x128xf32> to vector<128x128xf32>
    %17 = arith.addf %13, %16 : vector<128x128xf32>
    %cst_14 = arith.constant 0.000000e+00 : f32
    %18 = vector.broadcast %cst_14 : f32 to vector<128x128xf32>
    %19 = arith.maximumf %17, %18 : vector<128x128xf32>
    %20 = arith.truncf %19 : vector<128x128xf32> to vector<128x128xbf16>
    %c2 = arith.constant 2 : index
    %c0_15 = arith.constant 0 : index
    %c0_16 = arith.constant 0 : index
    %21 = vector.load %arg2[%c2, %c0_15, %c0_16] : memref<3x128x128xbf16, #tpu.memory_space<vmem>>, vector<1x128x128xbf16>
    %22 = vector.shape_cast %21 : vector<1x128x128xbf16> to vector<128x128xbf16>
    %cst_17 = arith.constant dense<0.000000e+00> : vector<128x128xf32>
    %23 = tpu.matmul %20, %22, %cst_17 {dimension_numbers = #tpu.dot_dimension_numbers<[1], [0], [0], [1], [0, 0, 1, 1], [], []>} : vector<128x128xbf16>, vector<128x128xbf16>, vector<128x128xf32> -> vector<128x128xf32>
    %c2_18 = arith.constant 2 : index
    %c0_19 = arith.constant 0 : index
    %c0_20 = arith.constant 0 : index
    %24 = vector.load %arg3[%c2_18, %c0_19, %c0_20] : memref<3x1x128xf32, #tpu.memory_space<vmem>>, vector<1x1x128xf32>
    %25 = vector.shape_cast %24 : vector<1x1x128xf32> to vector<1x128xf32>
    %26 = vector.broadcast %25 : vector<1x128xf32> to vector<128x128xf32>
    %27 = arith.addf %23, %26 : vector<128x128xf32>
    %28 = tpu.iota {dimensions = array<i32: 1>} : vector<128x128xi32>
    %c16_i32 = arith.constant 16 : i32
    %29 = vector.broadcast %c16_i32 : i32 to vector<128x128xi32>
    %30 = arith.cmpi slt, %28, %29 : vector<128x128xi32>
    %cst_21 = arith.constant -1.000000e+30 : f32
    %31 = vector.broadcast %cst_21 : f32 to vector<128x128xf32>
    %32 = arith.select %30, %27, %31 : vector<128x128xi1>, vector<128x128xf32>
    %cst_22 = arith.constant dense<0xFF800000> : vector<128xf32>
    %33 = vector.multi_reduction <maximumf>, %32, %cst_22 [1] : vector<128x128xf32> to vector<128xf32>
    %34 = vector.shape_cast %33 : vector<128xf32> to vector<128x1xf32>
    %35 = vector.broadcast %34 : vector<128x1xf32> to vector<128x128xf32>
    %36 = arith.subf %32, %35 : vector<128x128xf32>
    %37 = math.exp %36 : vector<128x128xf32>
    %cst_23 = arith.constant dense<0.000000e+00> : vector<128xf32>
    %38 = vector.multi_reduction <add>, %37, %cst_23 [1] : vector<128x128xf32> to vector<128xf32>
    %39 = vector.shape_cast %38 : vector<128xf32> to vector<128x1xf32>
    %40 = math.log %39 : vector<128x1xf32>
    %41 = vector.broadcast %40 : vector<128x1xf32> to vector<128x128xf32>
    %42 = arith.subf %36, %41 : vector<128x128xf32>
    %c0_24 = arith.constant 0 : index
    %c0_25 = arith.constant 0 : index
    %43 = vector.load %arg4[%c0_24, %c0_25] : memref<128x128xf32, #tpu.memory_space<vmem>>, vector<128x128xf32>
    tpu.vector_store %arg4[%c0_24, %c0_25], %42 {strides = array<i32>} : memref<128x128xf32, #tpu.memory_space<vmem>>, vector<128x128xf32>,
    return
  }
  func.func @transform_0(%arg0: i32) -> (i32, i32) {
    %c0_i32 = arith.constant 0 : i32
    %c0_i32_0 = arith.constant 0 : i32
    return %arg0, %c0_i32 : i32, i32
  }
  func.func @transform_1(%arg0: i32) -> (i32, i32, i32) {
    %c0_i32 = arith.constant 0 : i32
    %c0_i32_0 = arith.constant 0 : i32
    %c0_i32_1 = arith.constant 0 : i32
    %c0_i32_2 = arith.constant 0 : i32
    return %c0_i32, %c0_i32_0, %c0_i32_1 : i32, i32, i32
  }
  func.func @transform_2(%arg0: i32) -> (i32, i32, i32) {
    %c0_i32 = arith.constant 0 : i32
    %c0_i32_0 = arith.constant 0 : i32
    %c0_i32_1 = arith.constant 0 : i32
    %c0_i32_2 = arith.constant 0 : i32
    return %c0_i32, %c0_i32_0, %c0_i32_1 : i32, i32, i32
  }
  func.func @transform_3(%arg0: i32) -> (i32, i32) {
    %c0_i32 = arith.constant 0 : i32
    %c0_i32_0 = arith.constant 0 : i32
    return %arg0, %c0_i32 : i32, i32
  }
}

</mosaic_0001>

<llo_original>
// kernel: tpu_custom_call.1
$region0: #{tpu_custom_call.1}
  #allocation0 [shape = 'u32[]', space=smem, size = 0x4, offset = 0x4, fixed_abs, tag = 'smem constant byte address 0x4 - core index']
  #allocation1 [shape = 'u32[144,128]{1,0:T(1,128)}', space=vmem, size = 0x12000, scoped, tag = 'internal scratch']
  %s0 = inlined_call_operand.hbm [shape: bf16[128,128], index: 0, kind: input, shape index: {}]
  %s1 = inlined_call_operand.hbm [shape: bf16[3,128,128], index: 1, kind: input, shape index: {}]
  %s2 = inlined_call_operand.vmem [shape: f32[3,1,128], index: 2, kind: input, shape index: {}]
  %s3 = inlined_call_operand.hbm [shape: f32[128,128], index: 3, kind: output, shape index: {}]
  %s4 = sld [smem:[#allocation0]]
  $region30: #{tpu_custom_call.1} parent=0
    _
  %s6 = ssub.s32 1, %s4
  %s7 = scalar_select 0, %s6, %s4
  $region1: #{tpu_custom_call.1} parent=0
    #allocation2 [shape = 'u8[32768]{0}', space=vmem, size = 0x8000, scoped, tag = 'input window, operand 0, single buffered']
    #allocation3 [shape = 's32[1]{0}', space=sflag, size = 0x4, scoped, tag = 'scoped memory for tpu_custom_call.1']
    #allocation4 [shape = 's32[1]{0}', space=sflag, size = 0x4, scoped, tag = 'scoped memory for tpu_custom_call.1']
    #allocation5 [shape = 'u8[98304]{0}', space=vmem, size = 0x18000, scoped, tag = 'input window, operand 1, single buffered']
    #allocation6 [shape = 's32[1]{0}', space=sflag, size = 0x4, scoped, tag = 'scoped memory for tpu_custom_call.1']
    #allocation7 [shape = 'u8[65536]{0}', space=vmem, size = 0x10000, scoped, tag = 'output window, operand 0, single buffered']
    %8 = vsyncpa [#allocation3], 0
    %9 = vsyncpa [#allocation6], 0
    %10 = vsyncpa [#allocation4], 0
    // Predicated region
    $region2: #{tpu_custom_call.1} parent=1 // pred_check
      _
    $region3: #{tpu_custom_call.1} parent=1 // pred_check_branch
      %12 = sbr.rel (0) target = $region5
    $region4: #{tpu_custom_call.1} parent=1 // pred_region
      %s14 = ssub.s32 1024, 1024
      %15 = vsyncadd [#allocation3], %s14
      %s16 = sshll.u32 [#allocation2], 4
      %s17 = int_to_ptr.vmem [resolvable:$true] %s16
      %22 = dma.hbm_to_vmem [thread:$0]  %s0, 1024, %s17, [#allocation3], 64, 64, 4
    $region5: #{tpu_custom_call.1} parent=1 // pred_fallthru
      _
    // Predicated region
    $region6: #{tpu_custom_call.1} parent=1 // pred_check
      _
    $region7: #{tpu_custom_call.1} parent=1 // pred_check_branch
      %24 = sbr.rel (0) target = $region9
    $region8: #{tpu_custom_call.1} parent=1 // pred_region
      %s26 = ssub.s32 3072, 3072
      %27 = vsyncadd [#allocation6], %s26
      %s28 = sshll.u32 [#allocation5], 4
      %s29 = int_to_ptr.vmem [resolvable:$true] %s28
      %34 = dma.hbm_to_vmem [thread:$0]  %s1, 3072, %s29, [#allocation6], 64, 64, 4
    $region9: #{tpu_custom_call.1} parent=1 // pred_fallthru
      _
    // Predicated region
    $region10: #{tpu_custom_call.1} parent=1 // pred_check
      _
    $region11: #{tpu_custom_call.1} parent=1 // pred_check_branch
      %36 = sbr.rel (0) target = $region13
    $region12: #{tpu_custom_call.1} parent=1 // pred_region
      _
    $region13: #{tpu_custom_call.1} parent=1 // pred_fallthru
      _
    // Predicated region
    $region14: #{tpu_custom_call.1} parent=1 // pred_check
      _
    $region15: #{tpu_custom_call.1} parent=1 // pred_check_branch
      %38 = sbr.rel (0) target = $region17
    $region16: #{tpu_custom_call.1} parent=1 // pred_region
      %39 = dma.done [#allocation3], 1024
    $region17: #{tpu_custom_call.1} parent=1 // pred_fallthru
      _
    // Predicated region
    $region18: #{tpu_custom_call.1} parent=1 // pred_check
      _
    $region19: #{tpu_custom_call.1} parent=1 // pred_check_branch
      %41 = sbr.rel (0) target = $region21
    $region20: #{tpu_custom_call.1} parent=1 // pred_region
      %42 = dma.done [#allocation6], 3072
    $region21: #{tpu_custom_call.1} parent=1 // pred_fallthru
      _
    %v44 = vld [vmem:[#allocation2] sm:$0xf]
    %v45 = vld [vmem:[#allocation2 + $0x4] sm:$0xf]
    %v46 = vld [vmem:[#allocation2 + $0x8] sm:$0xf]
    %v47 = vld [vmem:[#allocation2 + $0xc] sm:$0xf]
    %v48 = vld [vmem:[#allocation2 + $0x10] sm:$0xf]
    %v49 = vld [vmem:[#allocation2 + $0x14] sm:$0xf]
    %v50 = vld [vmem:[#allocation2 + $0x18] sm:$0xf]
    %v51 = vld [vmem:[#allocation2 + $0x1c] sm:$0xf]
    %v52 = vld [vmem:[#allocation2 + $0x20] sm:$0xf]
    %v53 = vld [vmem:[#allocation2 + $0x24] sm:$0xf]
    %v54 = vld [vmem:[#allocation2 + $0x28] sm:$0xf]
    %v55 = vld [vmem:[#allocation2 + $0x2c] sm:$0xf]
    %v56 = vld [vmem:[#allocation2 + $0x30] sm:$0xf]
    %v57 = vld [vmem:[#allocation2 + $0x34] sm:$0xf]
    %v58 = vld [vmem:[#allocation2 + $0x38] sm:$0xf]
    %v59 = vld [vmem:[#allocation2 + $0x3c] sm:$0xf]
    %v60 = vld [vmem:[#allocation5] sm:$0xf]
    %v61 = vld [vmem:[#allocation5 + $0x4] sm:$0xf]
    %v62 = vld [vmem:[#allocation5 + $0x8] sm:$0xf]
    %v63 = vld [vmem:[#allocation5 + $0xc] sm:$0xf]
    %v64 = vld [vmem:[#allocation5 + $0x10] sm:$0xf]
    %v65 = vld [vmem:[#allocation5 + $0x14] sm:$0xf]
    %v66 = vld [vmem:[#allocation5 + $0x18] sm:$0xf]
    %v67 = vld [vmem:[#allocation5 + $0x1c] sm:$0xf]
    %v68 = vld [vmem:[#allocation5 + $0x20] sm:$0xf]
    %v69 = vld [vmem:[#allocation5 + $0x24] sm:$0xf]
    %v70 = vld [vmem:[#allocation5 + $0x28] sm:$0xf]
    %v71 = vld [vmem:[#allocation5 + $0x2c] sm:$0xf]
    %v72 = vld [vmem:[#allocation5 + $0x30] sm:$0xf]
    %v73 = vld [vmem:[#allocation5 + $0x34] sm:$0xf]
    %v74 = vld [vmem:[#allocation5 + $0x38] sm:$0xf]
    %v75 = vld [vmem:[#allocation5 + $0x3c] sm:$0xf]
    %v76 = vld [vmem:[%s2] sm:$0x1]
    %v78 = vlaneseq
    %v79 = vshrl.u32 %v78, 7
    %v80 = vsub.s32 0, %v79
    %v81 = vrot.slane %v76, %v80
    %v99 = vunpack.c.l.b16 %v44
    %v100 = vunpack.c.l.b16 %v45
    %v101 = vunpack.c.l.b16 %v46
    %v102 = vunpack.c.l.b16 %v47
    %v103 = vunpack.c.l.b16 %v48
    %v104 = vunpack.c.l.b16 %v49
    %v105 = vunpack.c.l.b16 %v50
    %v106 = vunpack.c.l.b16 %v51
    %v107 = vunpack.c.l.b16 %v52
    %v108 = vunpack.c.l.b16 %v53
    %v109 = vunpack.c.l.b16 %v54
    %v110 = vunpack.c.l.b16 %v55
    %v111 = vunpack.c.l.b16 %v56
    %v112 = vunpack.c.l.b16 %v57
    %v113 = vunpack.c.l.b16 %v58
    %v114 = vunpack.c.l.b16 %v59
    %v115 = vpack.c.b16 %v100, %v99
    %v116 = vpack.c.b16 %v102, %v101
    %v117 = vpack.c.b16 %v104, %v103
    %v118 = vpack.c.b16 %v106, %v105
    %v119 = vpack.c.b16 %v108, %v107
    %v120 = vpack.c.b16 %v110, %v109
    %v121 = vpack.c.b16 %v112, %v111
    %v122 = vpack.c.b16 %v114, %v113
    %v147 = vunpack.c.l.b16 %v60
    %v148 = vunpack.c.l.b16 %v61
    %v149 = vunpack.c.l.b16 %v62
    %v150 = vunpack.c.l.b16 %v63
    %v151 = vunpack.c.l.b16 %v64
    %v152 = vunpack.c.l.b16 %v65
    %v153 = vunpack.c.l.b16 %v66
    %v154 = vunpack.c.l.b16 %v67
    %v155 = vunpack.c.l.b16 %v68
    %v156 = vunpack.c.l.b16 %v69
    %v157 = vunpack.c.l.b16 %v70
    %v158 = vunpack.c.l.b16 %v71
    %v159 = vunpack.c.l.b16 %v72
    %v160 = vunpack.c.l.b16 %v73
    %v161 = vunpack.c.l.b16 %v74
    %v162 = vunpack.c.l.b16 %v75
    %v163 = vpack.c.b16 %v148, %v147
    %v164 = vpack.c.b16 %v150, %v149
    %v165 = vpack.c.b16 %v152, %v151
    %v166 = vpack.c.b16 %v154, %v153
    %v167 = vpack.c.b16 %v156, %v155
    %v168 = vpack.c.b16 %v158, %v157
    %v169 = vpack.c.b16 %v160, %v159
    %v170 = vpack.c.b16 %v162, %v161
    %179 = vmatprep.subr.bf16.mxu0 0
    %180 = vmatpush1.bf16.msra.mxu0 %v163
    %181 = vmatprep.subr.bf16.mxu0 0
    %182 = vmatpush1.bf16.msra.mxu0 %v164
    %183 = vmatprep.subr.bf16.mxu0 0
    %184 = vmatpush1.bf16.msra.mxu0 %v165
    %185 = vmatprep.subr.bf16.mxu0 0
    %186 = vmatpush1.bf16.msra.mxu0 %v166
    %187 = vmatprep.subr.bf16.mxu0 0
    %188 = vmatpush1.bf16.msra.mxu0 %v167
    %189 = vmatprep.subr.bf16.mxu0 0
    %190 = vmatpush1.bf16.msra.mxu0 %v168
    %191 = vmatprep.subr.bf16.mxu0 0
    %192 = vmatpush1.bf16.msra.mxu0 %v169
    %193 = vmatprep.subr.bf16.mxu0 0
    %194 = vmatpush1.bf16.msra.mxu0 %v170
    %195 = vmatprep.subr.bf16.mxu0 0
    %196 = vmatpush1.bf16.msra.mxu0 0
    %197 = vmatprep.subr.bf16.mxu0 0
    %198 = vmatpush1.bf16.msra.mxu0 0
    %199 = vmatprep.subr.bf16.mxu0 0
    %200 = vmatpush1.bf16.msra.mxu0 0
    %201 = vmatprep.subr.bf16.mxu0 0
    %202 = vmatpush1.bf16.msra.mxu0 0
    %203 = vmatprep.subr.bf16.mxu0 0
    %204 = vmatpush1.bf16.msra.mxu0 0
    %205 = vmatprep.subr.bf16.mxu0 0
    %206 = vmatpush1.bf16.msra.mxu0 0
    %207 = vmatprep.subr.bf16.mxu0 0
    %208 = vmatpush1.bf16.msra.mxu0 0
    %209 = vmatprep.subr.bf16.mxu0 0
    %210 = vmatpush1.bf16.msra.mxu0 0
    %211 = vmatprep.mubr.bf16.mxu0 0
    %212 = vmatmul.mubr.bf16.gmra.mrb[0].mxu0 %v115
    %v213 = vpop.f32.mrb[0].mxu0
    %v214 = vadd.f32 %v81, %v213
    %v215 = vpop.f32.mrb[0].mxu0
    %v216 = vpop.f32.mrb[0].mxu0
    %v217 = vadd.f32 %v81, %v216
    %v218 = vpop.f32.mrb[0].mxu0
    %219 = vmatprep.mubr.bf16.mxu0 0
    %220 = vmatmul.mubr.bf16.gmra.mrb[0].mxu0 %v116
    %v221 = vpop.f32.mrb[0].mxu0
    %v222 = vadd.f32 %v81, %v221
    %v223 = vpop.f32.mrb[0].mxu0
    %v224 = vpop.f32.mrb[0].mxu0
    %v225 = vadd.f32 %v81, %v224
    %v226 = vpop.f32.mrb[0].mxu0
    %227 = vmatprep.mubr.bf16.mxu0 0
    %228 = vmatmul.mubr.bf16.gmra.mrb[0].mxu0 %v117
    %v229 = vpop.f32.mrb[0].mxu0
    %v230 = vadd.f32 %v81, %v229
    %v231 = vpop.f32.mrb[0].mxu0
    %v232 = vpop.f32.mrb[0].mxu0
    %v233 = vadd.f32 %v81, %v232
    %v234 = vpop.f32.mrb[0].mxu0
    %235 = vmatprep.mubr.bf16.mxu0 0
    %236 = vmatmul.mubr.bf16.gmra.mrb[0].mxu0 %v118
    %v237 = vpop.f32.mrb[0].mxu0
    %v238 = vadd.f32 %v81, %v237
    %v239 = vpop.f32.mrb[0].mxu0
    %v240 = vpop.f32.mrb[0].mxu0
    %v241 = vadd.f32 %v81, %v240
    %v242 = vpop.f32.mrb[0].mxu0
    %243 = vmatprep.mubr.bf16.mxu0 0
    %244 = vmatmul.mubr.bf16.gmra.mrb[0].mxu0 %v119
    %v245 = vpop.f32.mrb[0].mxu0
    %v246 = vadd.f32 %v81, %v245
    %v247 = vpop.f32.mrb[0].mxu0
    %v248 = vpop.f32.mrb[0].mxu0
    %v249 = vadd.f32 %v81, %v248
    %v250 = vpop.f32.mrb[0].mxu0
    %251 = vmatprep.mubr.bf16.mxu0 0
    %252 = vmatmul.mubr.bf16.gmra.mrb[0].mxu0 %v120
    %v253 = vpop.f32.mrb[0].mxu0
    %v254 = vadd.f32 %v81, %v253
    %v255 = vpop.f32.mrb[0].mxu0
    %v256 = vpop.f32.mrb[0].mxu0
    %v257 = vadd.f32 %v81, %v256
    %v258 = vpop.f32.mrb[0].mxu0
    %259 = vmatprep.mubr.bf16.mxu0 0
    %260 = vmatmul.mubr.bf16.gmra.mrb[0].mxu0 %v121
    %v261 = vpop.f32.mrb[0].mxu0
    %v262 = vadd.f32 %v81, %v261
    %v263 = vpop.f32.mrb[0].mxu0
    %v264 = vpop.f32.mrb[0].mxu0
    %v265 = vadd.f32 %v81, %v264
    %v266 = vpop.f32.mrb[0].mxu0
    %267 = vmatprep.mubr.bf16.mxu0 0
    %268 = vmatmul.mubr.bf16.gmra.mrb[0].mxu0 %v122
    %v269 = vpop.f32.mrb[0].mxu0
    %v270 = vadd.f32 %v81, %v269
    %v271 = vpop.f32.mrb[0].mxu0
    %v272 = vpop.f32.mrb[0].mxu0
    %v273 = vadd.f32 %v81, %v272
    %v274 = vpop.f32.mrb[0].mxu0
    %275 = vdwg.mxu0
    %v276 = vmax.f32 %v214, 0.0
    %v277 = vmax.f32 %v217, 0.0
    %v278 = vmax.f32 %v222, 0.0
    %v279 = vmax.f32 %v225, 0.0
    %v280 = vmax.f32 %v230, 0.0
    %v281 = vmax.f32 %v233, 0.0
    %v282 = vmax.f32 %v238, 0.0
    %v283 = vmax.f32 %v241, 0.0
    %v284 = vmax.f32 %v246, 0.0
    %v285 = vmax.f32 %v249, 0.0
    %v286 = vmax.f32 %v254, 0.0
    %v287 = vmax.f32 %v257, 0.0
    %v288 = vmax.f32 %v262, 0.0
    %v289 = vmax.f32 %v265, 0.0
    %v290 = vmax.f32 %v270, 0.0
    %v291 = vmax.f32 %v273, 0.0
    %v292 = vpack.c.bf16 %v277, %v276
    %v293 = vpack.c.bf16 %v279, %v278
    %v294 = vpack.c.bf16 %v281, %v280
    %v295 = vpack.c.bf16 %v283, %v282
    %v296 = vpack.c.bf16 %v285, %v284
    %v297 = vpack.c.bf16 %v287, %v286
    %v298 = vpack.c.bf16 %v289, %v288
    %v299 = vpack.c.bf16 %v291, %v290
    %s300 = scalar_lea.vmem [#allocation5], 64
    %v301 = vld [vmem:[%s300] sm:$0xf]
    %v302 = vld [vmem:[%s300 + $0x4] sm:$0xf]
    %v303 = vld [vmem:[%s300 + $0x8] sm:$0xf]
    %v304 = vld [vmem:[%s300 + $0xc] sm:$0xf]
    %v305 = vld [vmem:[%s300 + $0x10] sm:$0xf]
    %v306 = vld [vmem:[%s300 + $0x14] sm:$0xf]
    %v307 = vld [vmem:[%s300 + $0x18] sm:$0xf]
    %v308 = vld [vmem:[%s300 + $0x1c] sm:$0xf]
    %v309 = vld [vmem:[%s300 + $0x20] sm:$0xf]
    %v310 = vld [vmem:[%s300 + $0x24] sm:$0xf]
    %v311 = vld [vmem:[%s300 + $0x28] sm:$0xf]
    %v312 = vld [vmem:[%s300 + $0x2c] sm:$0xf]
    %v313 = vld [vmem:[%s300 + $0x30] sm:$0xf]
    %v314 = vld [vmem:[%s300 + $0x34] sm:$0xf]
    %v315 = vld [vmem:[%s300 + $0x38] sm:$0xf]
    %v316 = vld [vmem:[%s300 + $0x3c] sm:$0xf]
    %s317 = scalar_lea.vmem %s2, 1
    %v318 = vld [vmem:[%s317] sm:$0x1]
    %v320 = vlaneseq
    %v321 = vshrl.u32 %v320, 7
    %v322 = vsub.s32 0, %v321
    %v323 = vrot.slane %v318, %v322
    %v341 = vunpack.c.l.b16 %v301
    %v342 = vunpack.c.l.b16 %v302
    %v343 = vunpack.c.l.b16 %v303
    %v344 = vunpack.c.l.b16 %v304
    %v345 = vunpack.c.l.b16 %v305
    %v346 = vunpack.c.l.b16 %v306
    %v347 = vunpack.c.l.b16 %v307
    %v348 = vunpack.c.l.b16 %v308
    %v349 = vunpack.c.l.b16 %v309
    %v350 = vunpack.c.l.b16 %v310
    %v351 = vunpack.c.l.b16 %v311
    %v352 = vunpack.c.l.b16 %v312
    %v353 = vunpack.c.l.b16 %v313
    %v354 = vunpack.c.l.b16 %v314
    %v355 = vunpack.c.l.b16 %v315
    %v356 = vunpack.c.l.b16 %v316
    %v357 = vpack.c.b16 %v342, %v341
    %v358 = vpack.c.b16 %v344, %v343
    %v359 = vpack.c.b16 %v346, %v345
    %v360 = vpack.c.b16 %v348, %v347
    %v361 = vpack.c.b16 %v350, %v349
    %v362 = vpack.c.b16 %v352, %v351
    %v363 = vpack.c.b16 %v354, %v353
    %v364 = vpack.c.b16 %v356, %v355
    %373 = vmatprep.subr.bf16.mxu0 0
    %374 = vmatpush1.bf16.msra.mxu0 %v357
    %375 = vmatprep.subr.bf16.mxu0 0
    %376 = vmatpush1.bf16.msra.mxu0 %v358
    %377 = vmatprep.subr.bf16.mxu0 0
    %378 = vmatpush1.bf16.msra.mxu0 %v359
    %379 = vmatprep.subr.bf16.mxu0 0
    %380 = vmatpush1.bf16.msra.mxu0 %v360
    %381 = vmatprep.subr.bf16.mxu0 0
    %382 = vmatpush1.bf16.msra.mxu0 %v361
    %383 = vmatprep.subr.bf16.mxu0 0
    %384 = vmatpush1.bf16.msra.mxu0 %v362
    %385 = vmatprep.subr.bf16.mxu0 0
    %386 = vmatpush1.bf16.msra.mxu0 %v363
    %387 = vmatprep.subr.bf16.mxu0 0
    %388 = vmatpush1.bf16.msra.mxu0 %v364
    %389 = vmatprep.subr.bf16.mxu0 0
    %390 = vmatpush1.bf16.msra.mxu0 0
    %391 = vmatprep.subr.bf16.mxu0 0
    %392 = vmatpush1.bf16.msra.mxu0 0
    %393 = vmatprep.subr.bf16.mxu0 0
    %394 = vmatpush1.bf16.msra.mxu0 0
    %395 = vmatprep.subr.bf16.mxu0 0
    %396 = vmatpush1.bf16.msra.mxu0 0
    %397 = vmatprep.subr.bf16.mxu0 0
    %398 = vmatpush1.bf16.msra.mxu0 0
    %399 = vmatprep.subr.bf16.mxu0 0
    %400 = vmatpush1.bf16.msra.mxu0 0
    %401 = vmatprep.subr.bf16.mxu0 0
    %402 = vmatpush1.bf16.msra.mxu0 0
    %403 = vmatprep.subr.bf16.mxu0 0
    %404 = vmatpush1.bf16.msra.mxu0 0
    %405 = vmatprep.mubr.bf16.mxu0 0
    %406 = vmatmul.mubr.bf16.gmra.mrb[0].mxu0 %v292
    %v407 = vpop.f32.mrb[0].mxu0
    %v408 = vadd.f32 %v323, %v407
    %v409 = vpop.f32.mrb[0].mxu0
    %v410 = vpop.f32.mrb[0].mxu0
    %v411 = vadd.f32 %v323, %v410
    %v412 = vpop.f32.mrb[0].mxu0
    %413 = vmatprep.mubr.bf16.mxu0 0
    %414 = vmatmul.mubr.bf16.gmra.mrb[0].mxu0 %v293
    %v415 = vpop.f32.mrb[0].mxu0
    %v416 = vadd.f32 %v323, %v415
    %v417 = vpop.f32.mrb[0].mxu0
    %v418 = vpop.f32.mrb[0].mxu0
    %v419 = vadd.f32 %v323, %v418
    %v420 = vpop.f32.mrb[0].mxu0
    %421 = vmatprep.mubr.bf16.mxu0 0
    %422 = vmatmul.mubr.bf16.gmra.mrb[0].mxu0 %v294
    %v423 = vpop.f32.mrb[0].mxu0
    %v424 = vadd.f32 %v323, %v423
    %v425 = vpop.f32.mrb[0].mxu0
    %v426 = vpop.f32.mrb[0].mxu0
    %v427 = vadd.f32 %v323, %v426
    %v428 = vpop.f32.mrb[0].mxu0
    %429 = vmatprep.mubr.bf16.mxu0 0
    %430 = vmatmul.mubr.bf16.gmra.mrb[0].mxu0 %v295
    %v431 = vpop.f32.mrb[0].mxu0
    %v432 = vadd.f32 %v323, %v431
    %v433 = vpop.f32.mrb[0].mxu0
    %v434 = vpop.f32.mrb[0].mxu0
    %v435 = vadd.f32 %v323, %v434
    %v436 = vpop.f32.mrb[0].mxu0
    %437 = vmatprep.mubr.bf16.mxu0 0
    %438 = vmatmul.mubr.bf16.gmra.mrb[0].mxu0 %v296
    %v439 = vpop.f32.mrb[0].mxu0
    %v440 = vadd.f32 %v323, %v439
    %v441 = vpop.f32.mrb[0].mxu0
    %v442 = vpop.f32.mrb[0].mxu0
    %v443 = vadd.f32 %v323, %v442
    %v444 = vpop.f32.mrb[0].mxu0
    %445 = vmatprep.mubr.bf16.mxu0 0
    %446 = vmatmul.mubr.bf16.gmra.mrb[0].mxu0 %v297
    %v447 = vpop.f32.mrb[0].mxu0
    %v448 = vadd.f32 %v323, %v447
    %v449 = vpop.f32.mrb[0].mxu0
    %v450 = vpop.f32.mrb[0].mxu0
    %v451 = vadd.f32 %v323, %v450
    %v452 = vpop.f32.mrb[0].mxu0
    %453 = vmatprep.mubr.bf16.mxu0 0
    %454 = vmatmul.mubr.bf16.gmra.mrb[0].mxu0 %v298
    %v455 = vpop.f32.mrb[0].mxu0
    %v456 = vadd.f32 %v323, %v455
    %v457 = vpop.f32.mrb[0].mxu0
    %v458 = vpop.f32.mrb[0].mxu0
    %v459 = vadd.f32 %v323, %v458
    %v460 = vpop.f32.mrb[0].mxu0
    %461 = vmatprep.mubr.bf16.mxu0 0
    %462 = vmatmul.mubr.bf16.gmra.mrb[0].mxu0 %v299
    %v463 = vpop.f32.mrb[0].mxu0
    %v464 = vadd.f32 %v323, %v463
    %v465 = vpop.f32.mrb[0].mxu0
    %v466 = vpop.f32.mrb[0].mxu0
    %v467 = vadd.f32 %v323, %v466
    %v468 = vpop.f32.mrb[0].mxu0
    %469 = vdwg.mxu0
    %v470 = vmax.f32 %v408, 0.0
    %v471 = vmax.f32 %v411, 0.0
    %v472 = vmax.f32 %v416, 0.0
    %v473 = vmax.f32 %v419, 0.0
    %v474 = vmax.f32 %v424, 0.0
    %v475 = vmax.f32 %v427, 0.0
    %v476 = vmax.f32 %v432, 0.0
    %v477 = vmax.f32 %v435, 0.0
    %v478 = vmax.f32 %v440, 0.0
    %v479 = vmax.f32 %v443, 0.0
    %v480 = vmax.f32 %v448, 0.0
    %v481 = vmax.f32 %v451, 0.0
    %v482 = vmax.f32 %v456, 0.0
    %v483 = vmax.f32 %v459, 0.0
    %v484 = vmax.f32 %v464, 0.0
    %v485 = vmax.f32 %v467, 0.0
    %v486 = vpack.c.bf16 %v471, %v470
    %v487 = vpack.c.bf16 %v473, %v472
    %v488 = vpack.c.bf16 %v475, %v474
    %v489 = vpack.c.bf16 %v477, %v476
    %v490 = vpack.c.bf16 %v479, %v478
    %v491 = vpack.c.bf16 %v481, %v480
    %v492 = vpack.c.bf16 %v483, %v482
    %v493 = vpack.c.bf16 %v485, %v484
    %s494 = scalar_lea.vmem [#allocation5], 128
    %v495 = vld [vmem:[%s494] sm:$0xf]
    %v496 = vld [vmem:[%s494 + $0x4] sm:$0xf]
    %v497 = vld [vmem:[%s494 + $0x8] sm:$0xf]
    %v498 = vld [vmem:[%s494 + $0xc] sm:$0xf]
    %v499 = vld [vmem:[%s494 + $0x10] sm:$0xf]
    %v500 = vld [vmem:[%s494 + $0x14] sm:$0xf]
    %v501 = vld [vmem:[%s494 + $0x18] sm:$0xf]
    %v502 = vld [vmem:[%s494 + $0x1c] sm:$0xf]
    %v503 = vld [vmem:[%s494 + $0x20] sm:$0xf]
    %v504 = vld [vmem:[%s494 + $0x24] sm:$0xf]
    %v505 = vld [vmem:[%s494 + $0x28] sm:$0xf]
    %v506 = vld [vmem:[%s494 + $0x2c] sm:$0xf]
    %v507 = vld [vmem:[%s494 + $0x30] sm:$0xf]
    %v508 = vld [vmem:[%s494 + $0x34] sm:$0xf]
    %v509 = vld [vmem:[%s494 + $0x38] sm:$0xf]
    %v510 = vld [vmem:[%s494 + $0x3c] sm:$0xf]
    %s511 = scalar_lea.vmem %s2, 2
    %v512 = vld [vmem:[%s511] sm:$0x1]
    %v514 = vlaneseq
    %v515 = vshrl.u32 %v514, 7
    %v516 = vsub.s32 0, %v515
    %v517 = vrot.slane %v512, %v516
    %v535 = vunpack.c.l.b16 %v495
    %v536 = vunpack.c.l.b16 %v496
    %v537 = vunpack.c.l.b16 %v497
    %v538 = vunpack.c.l.b16 %v498
    %v539 = vunpack.c.l.b16 %v499
    %v540 = vunpack.c.l.b16 %v500
    %v541 = vunpack.c.l.b16 %v501
    %v542 = vunpack.c.l.b16 %v502
    %v543 = vunpack.c.l.b16 %v503
    %v544 = vunpack.c.l.b16 %v504
    %v545 = vunpack.c.l.b16 %v505
    %v546 = vunpack.c.l.b16 %v506
    %v547 = vunpack.c.l.b16 %v507
    %v548 = vunpack.c.l.b16 %v508
    %v549 = vunpack.c.l.b16 %v509
    %v550 = vunpack.c.l.b16 %v510
    %v551 = vpack.c.b16 %v536, %v535
    %v552 = vpack.c.b16 %v538, %v537
    %v553 = vpack.c.b16 %v540, %v539
    %v554 = vpack.c.b16 %v542, %v541
    %v555 = vpack.c.b16 %v544, %v543
    %v556 = vpack.c.b16 %v546, %v545
    %v557 = vpack.c.b16 %v548, %v547
    %v558 = vpack.c.b16 %v550, %v549
    %567 = vmatprep.subr.bf16.mxu0 0
    %568 = vmatpush1.bf16.msra.mxu0 %v551
    %569 = vmatprep.subr.bf16.mxu0 0
    %570 = vmatpush1.bf16.msra.mxu0 %v552
    %571 = vmatprep.subr.bf16.mxu0 0
    %572 = vmatpush1.bf16.msra.mxu0 %v553
    %573 = vmatprep.subr.bf16.mxu0 0
    %574 = vmatpush1.bf16.msra.mxu0 %v554
    %575 = vmatprep.subr.bf16.mxu0 0
    %576 = vmatpush1.bf16.msra.mxu0 %v555
    %577 = vmatprep.subr.bf16.mxu0 0
    %578 = vmatpush1.bf16.msra.mxu0 %v556
    %579 = vmatprep.subr.bf16.mxu0 0
    %580 = vmatpush1.bf16.msra.mxu0 %v557
    %581 = vmatprep.subr.bf16.mxu0 0
    %582 = vmatpush1.bf16.msra.mxu0 %v558
    %583 = vmatprep.subr.bf16.mxu0 0
    %584 = vmatpush1.bf16.msra.mxu0 0
    %585 = vmatprep.subr.bf16.mxu0 0
    %586 = vmatpush1.bf16.msra.mxu0 0
    %587 = vmatprep.subr.bf16.mxu0 0
    %588 = vmatpush1.bf16.msra.mxu0 0
    %589 = vmatprep.subr.bf16.mxu0 0
    %590 = vmatpush1.bf16.msra.mxu0 0
    %591 = vmatprep.subr.bf16.mxu0 0
    %592 = vmatpush1.bf16.msra.mxu0 0
    %593 = vmatprep.subr.bf16.mxu0 0
    %594 = vmatpush1.bf16.msra.mxu0 0
    %595 = vmatprep.subr.bf16.mxu0 0
    %596 = vmatpush1.bf16.msra.mxu0 0
    %597 = vmatprep.subr.bf16.mxu0 0
    %598 = vmatpush1.bf16.msra.mxu0 0
    %599 = vmatprep.mubr.bf16.mxu0 0
    %600 = vmatmul.mubr.bf16.gmra.mrb[0].mxu0 %v486
    %v601 = vpop.f32.mrb[0].mxu0
    %v602 = vadd.f32 %v517, %v601
    %v603 = vpop.f32.mrb[0].mxu0
    %v604 = vpop.f32.mrb[0].mxu0
    %v605 = vadd.f32 %v517, %v604
    %v606 = vpop.f32.mrb[0].mxu0
    %607 = vmatprep.mubr.bf16.mxu0 0
    %608 = vmatmul.mubr.bf16.gmra.mrb[0].mxu0 %v487
    %v609 = vpop.f32.mrb[0].mxu0
    %v610 = vadd.f32 %v517, %v609
    %v611 = vpop.f32.mrb[0].mxu0
    %v612 = vpop.f32.mrb[0].mxu0
    %v613 = vadd.f32 %v517, %v612
    %v614 = vpop.f32.mrb[0].mxu0
    %615 = vmatprep.mubr.bf16.mxu0 0
    %616 = vmatmul.mubr.bf16.gmra.mrb[0].mxu0 %v488
    %v617 = vpop.f32.mrb[0].mxu0
    %v618 = vadd.f32 %v517, %v617
    %v619 = vpop.f32.mrb[0].mxu0
    %v620 = vpop.f32.mrb[0].mxu0
    %v621 = vadd.f32 %v517, %v620
    %v622 = vpop.f32.mrb[0].mxu0
    %623 = vmatprep.mubr.bf16.mxu0 0
    %624 = vmatmul.mubr.bf16.gmra.mrb[0].mxu0 %v489
    %v625 = vpop.f32.mrb[0].mxu0
    %v626 = vadd.f32 %v517, %v625
    %v627 = vpop.f32.mrb[0].mxu0
    %v628 = vpop.f32.mrb[0].mxu0
    %v629 = vadd.f32 %v517, %v628
    %v630 = vpop.f32.mrb[0].mxu0
    %631 = vmatprep.mubr.bf16.mxu0 0
    %632 = vmatmul.mubr.bf16.gmra.mrb[0].mxu0 %v490
    %v633 = vpop.f32.mrb[0].mxu0
    %v634 = vadd.f32 %v517, %v633
    %v635 = vpop.f32.mrb[0].mxu0
    %v636 = vpop.f32.mrb[0].mxu0
    %v637 = vadd.f32 %v517, %v636
    %v638 = vpop.f32.mrb[0].mxu0
    %639 = vmatprep.mubr.bf16.mxu0 0
    %640 = vmatmul.mubr.bf16.gmra.mrb[0].mxu0 %v491
    %v641 = vpop.f32.mrb[0].mxu0
    %v642 = vadd.f32 %v517, %v641
    %v643 = vpop.f32.mrb[0].mxu0
    %v644 = vpop.f32.mrb[0].mxu0
    %v645 = vadd.f32 %v517, %v644
    %v646 = vpop.f32.mrb[0].mxu0
    %647 = vmatprep.mubr.bf16.mxu0 0
    %648 = vmatmul.mubr.bf16.gmra.mrb[0].mxu0 %v492
    %v649 = vpop.f32.mrb[0].mxu0
    %v650 = vadd.f32 %v517, %v649
    %v651 = vpop.f32.mrb[0].mxu0
    %v652 = vpop.f32.mrb[0].mxu0
    %v653 = vadd.f32 %v517, %v652
    %v654 = vpop.f32.mrb[0].mxu0
    %655 = vmatprep.mubr.bf16.mxu0 0
    %656 = vmatmul.mubr.bf16.gmra.mrb[0].mxu0 %v493
    %v657 = vpop.f32.mrb[0].mxu0
    %v658 = vadd.f32 %v517, %v657
    %v659 = vpop.f32.mrb[0].mxu0
    %v660 = vpop.f32.mrb[0].mxu0
    %v661 = vadd.f32 %v517, %v660
    %v662 = vpop.f32.mrb[0].mxu0
    %663 = vdwg.mxu0
    %v664 = vlaneseq
    %v665 = vand.u32 %v664, 127
    %vm666 = vcmp.lt.s32.totalorder %v665, 16
    %v667 = vsel %vm666, %v602, -1e+30
    %v668 = vsel %vm666, %v605, -1e+30
    %v669 = vsel %vm666, %v610, -1e+30
    %v670 = vsel %vm666, %v613, -1e+30
    %v671 = vsel %vm666, %v618, -1e+30
    %v672 = vsel %vm666, %v621, -1e+30
    %v673 = vsel %vm666, %v626, -1e+30
    %v674 = vsel %vm666, %v629, -1e+30
    %v675 = vsel %vm666, %v634, -1e+30
    %v676 = vsel %vm666, %v637, -1e+30
    %v677 = vsel %vm666, %v642, -1e+30
    %v678 = vsel %vm666, %v645, -1e+30
    %v679 = vsel %vm666, %v650, -1e+30
    %v680 = vsel %vm666, %v653, -1e+30
    %v681 = vsel %vm666, %v658, -1e+30
    %v682 = vsel %vm666, %v661, -1e+30
    %683 = vmax.xlane.f32.xlu0 %v667
    %v684 = vpop.xlane.xlu0 %683
    %685 = vmax.xlane.f32.xlu0 %v668
    %v686 = vpop.xlane.xlu0 %685
    %687 = vmax.xlane.f32.xlu0 %v669
    %v688 = vpop.xlane.xlu0 %687
    %689 = vmax.xlane.f32.xlu0 %v670
    %v690 = vpop.xlane.xlu0 %689
    %691 = vmax.xlane.f32.xlu0 %v671
    %v692 = vpop.xlane.xlu0 %691
    %693 = vmax.xlane.f32.xlu0 %v672
    %v694 = vpop.xlane.xlu0 %693
    %695 = vmax.xlane.f32.xlu0 %v673
    %v696 = vpop.xlane.xlu0 %695
    %697 = vmax.xlane.f32.xlu0 %v674
    %v698 = vpop.xlane.xlu0 %697
    %699 = vmax.xlane.f32.xlu0 %v675
    %v700 = vpop.xlane.xlu0 %699
    %701 = vmax.xlane.f32.xlu0 %v676
    %v702 = vpop.xlane.xlu0 %701
    %703 = vmax.xlane.f32.xlu0 %v677
    %v704 = vpop.xlane.xlu0 %703
    %705 = vmax.xlane.f32.xlu0 %v678
    %v706 = vpop.xlane.xlu0 %705
    %707 = vmax.xlane.f32.xlu0 %v679
    %v708 = vpop.xlane.xlu0 %707
    %709 = vmax.xlane.f32.xlu0 %v680
    %v710 = vpop.xlane.xlu0 %709
    %711 = vmax.xlane.f32.xlu0 %v681
    %v712 = vpop.xlane.xlu0 %711
    %713 = vmax.xlane.f32.xlu0 %v682
    %v714 = vpop.xlane.xlu0 %713
    %v715 = vsub.f32 %v667, %v684
    %v716 = vsub.f32 %v668, %v686
    %v717 = vsub.f32 %v669, %v688
    %v718 = vsub.f32 %v670, %v690
    %v719 = vsub.f32 %v671, %v692
    %v720 = vsub.f32 %v672, %v694
    %v721 = vsub.f32 %v673, %v696
    %v722 = vsub.f32 %v674, %v698
    %v723 = vsub.f32 %v675, %v700
    %v724 = vsub.f32 %v676, %v702
    %v725 = vsub.f32 %v677, %v704
    %v726 = vsub.f32 %v678, %v706
    %v727 = vsub.f32 %v679, %v708
    %v728 = vsub.f32 %v680, %v710
    %v729 = vsub.f32 %v681, %v712
    %v730 = vsub.f32 %v682, %v714
    %v731 = vmul.f32 %v715, 1.442695
    %v732 = vpow.pop %v731
    %v733 = vmul.f32 %v716, 1.442695
    %v734 = vpow.pop %v733
    %v735 = vmul.f32 %v717, 1.442695
    %v736 = vpow.pop %v735
    %v737 = vmul.f32 %v718, 1.442695
    %v738 = vpow.pop %v737
    %v739 = vmul.f32 %v719, 1.442695
    %v740 = vpow.pop %v739
    %v741 = vmul.f32 %v720, 1.442695
    %v742 = vpow.pop %v741
    %v743 = vmul.f32 %v721, 1.442695
    %v744 = vpow.pop %v743
    %v745 = vmul.f32 %v722, 1.442695
    %v746 = vpow.pop %v745
    %v747 = vmul.f32 %v723, 1.442695
    %v748 = vpow.pop %v747
    %v749 = vmul.f32 %v724, 1.442695
    %v750 = vpow.pop %v749
    %v751 = vmul.f32 %v725, 1.442695
    %v752 = vpow.pop %v751
    %v753 = vmul.f32 %v726, 1.442695
    %v754 = vpow.pop %v753
    %v755 = vmul.f32 %v727, 1.442695
    %v756 = vpow.pop %v755
    %v757 = vmul.f32 %v728, 1.442695
    %v758 = vpow.pop %v757
    %v759 = vmul.f32 %v729, 1.442695
    %v760 = vpow.pop %v759
    %v761 = vmul.f32 %v730, 1.442695
    %v762 = vpow.pop %v761
    %763 = vadd.xlane.f32.xlu0 %v732
    %v764 = vpop.xlane.xlu0 %763
    %765 = vadd.xlane.f32.xlu0 %v734
    %v766 = vpop.xlane.xlu0 %765
    %767 = vadd.xlane.f32.xlu0 %v736
    %v768 = vpop.xlane.xlu0 %767
    %769 = vadd.xlane.f32.xlu0 %v738
    %v770 = vpop.xlane.xlu0 %769
    %771 = vadd.xlane.f32.xlu0 %v740
    %v772 = vpop.xlane.xlu0 %771
    %773 = vadd.xlane.f32.xlu0 %v742
    %v774 = vpop.xlane.xlu0 %773
    %775 = vadd.xlane.f32.xlu0 %v744
    %v776 = vpop.xlane.xlu0 %775
    %777 = vadd.xlane.f32.xlu0 %v746
    %v778 = vpop.xlane.xlu0 %777
    %779 = vadd.xlane.f32.xlu0 %v748
    %v780 = vpop.xlane.xlu0 %779
    %781 = vadd.xlane.f32.xlu0 %v750
    %v782 = vpop.xlane.xlu0 %781
    %783 = vadd.xlane.f32.xlu0 %v752
    %v784 = vpop.xlane.xlu0 %783
    %785 = vadd.xlane.f32.xlu0 %v754
    %v786 = vpop.xlane.xlu0 %785
    %787 = vadd.xlane.f32.xlu0 %v756
    %v788 = vpop.xlane.xlu0 %787
    %789 = vadd.xlane.f32.xlu0 %v758
    %v790 = vpop.xlane.xlu0 %789
    %791 = vadd.xlane.f32.xlu0 %v760
    %v792 = vpop.xlane.xlu0 %791
    %793 = vadd.xlane.f32.xlu0 %v762
    %v794 = vpop.xlane.xlu0 %793
    %v795 = vlog2.pop %v764
    %v796 = vmul.f32 %v795, 0.6931472
    %v797 = vlog2.pop %v766
    %v798 = vmul.f32 %v797, 0.6931472
    %v799 = vlog2.pop %v768
    %v800 = vmul.f32 %v799, 0.6931472
    %v801 = vlog2.pop %v770
    %v802 = vmul.f32 %v801, 0.6931472
    %v803 = vlog2.pop %v772
    %v804 = vmul.f32 %v803, 0.6931472
    %v805 = vlog2.pop %v774
    %v806 = vmul.f32 %v805, 0.6931472
    %v807 = vlog2.pop %v776
    %v808 = vmul.f32 %v807, 0.6931472
    %v809 = vlog2.pop %v778
    %v810 = vmul.f32 %v809, 0.6931472
    %v811 = vlog2.pop %v780
    %v812 = vmul.f32 %v811, 0.6931472
    %v813 = vlog2.pop %v782
    %v814 = vmul.f32 %v813, 0.6931472
    %v815 = vlog2.pop %v784
    %v816 = vmul.f32 %v815, 0.6931472
    %v817 = vlog2.pop %v786
    %v818 = vmul.f32 %v817, 0.6931472
    %v819 = vlog2.pop %v788
    %v820 = vmul.f32 %v819, 0.6931472
    %v821 = vlog2.pop %v790
    %v822 = vmul.f32 %v821, 0.6931472
    %v823 = vlog2.pop %v792
    %v824 = vmul.f32 %v823, 0.6931472
    %v825 = vlog2.pop %v794
    %v826 = vmul.f32 %v825, 0.6931472
    %v827 = vsub.f32 %v715, %v796
    %v828 = vsub.f32 %v716, %v798
    %v829 = vsub.f32 %v717, %v800
    %v830 = vsub.f32 %v718, %v802
    %v831 = vsub.f32 %v719, %v804
    %v832 = vsub.f32 %v720, %v806
    %v833 = vsub.f32 %v721, %v808
    %v834 = vsub.f32 %v722, %v810
    %v835 = vsub.f32 %v723, %v812
    %v836 = vsub.f32 %v724, %v814
    %v837 = vsub.f32 %v725, %v816
    %v838 = vsub.f32 %v726, %v818
    %v839 = vsub.f32 %v727, %v820
    %v840 = vsub.f32 %v728, %v822
    %v841 = vsub.f32 %v729, %v824
    %v842 = vsub.f32 %v730, %v826
    %843 = vst [vmem:[#allocation7] sm:$0xff] %v827
    %844 = vst [vmem:[#allocation7 + $0x8] sm:$0xff] %v828
    %845 = vst [vmem:[#allocation7 + $0x10] sm:$0xff] %v829
    %846 = vst [vmem:[#allocation7 + $0x18] sm:$0xff] %v830
    %847 = vst [vmem:[#allocation7 + $0x20] sm:$0xff] %v831
    %848 = vst [vmem:[#allocation7 + $0x28] sm:$0xff] %v832
    %849 = vst [vmem:[#allocation7 + $0x30] sm:$0xff] %v833
    %850 = vst [vmem:[#allocation7 + $0x38] sm:$0xff] %v834
    %851 = vst [vmem:[#allocation7 + $0x40] sm:$0xff] %v835
    %852 = vst [vmem:[#allocation7 + $0x48] sm:$0xff] %v836
    %853 = vst [vmem:[#allocation7 + $0x50] sm:$0xff] %v837
    %854 = vst [vmem:[#allocation7 + $0x58] sm:$0xff] %v838
    %855 = vst [vmem:[#allocation7 + $0x60] sm:$0xff] %v839
    %856 = vst [vmem:[#allocation7 + $0x68] sm:$0xff] %v840
    %857 = vst [vmem:[#allocation7 + $0x70] sm:$0xff] %v841
    %858 = vst [vmem:[#allocation7 + $0x78] sm:$0xff] %v842
    // Predicated region
    $region22: #{tpu_custom_call.1} parent=1 // pred_check
      _
    $region23: #{tpu_custom_call.1} parent=1 // pred_check_branch
      %860 = sbr.rel (0) target = $region25
    $region24: #{tpu_custom_call.1} parent=1 // pred_region
      %s862 = ssub.s32 2048, 2048
      %863 = vsyncadd [#allocation4], %s862
      %s864 = sshll.u32 [#allocation7], 4
      %s865 = int_to_ptr.vmem [resolvable:$true] %s864
      %870 = dma.vmem_to_hbm [thread:$0]  %s865, 2048, %s3, [#allocation4], 128, 128, 8
    $region25: #{tpu_custom_call.1} parent=1 // pred_fallthru
      _
    // Predicated region
    $region26: #{tpu_custom_call.1} parent=1 // pred_check
      _
    $region27: #{tpu_custom_call.1} parent=1 // pred_check_branch
      %872 = sbr.rel (0) target = $region29
    $region28: #{tpu_custom_call.1} parent=1 // pred_region
      %873 = dma.done [#allocation4], 2048
    $region29: #{tpu_custom_call.1} parent=1 // pred_fallthru
      _
    %874 = vsyncpa [#allocation3], 1
    %875 = vsyncpa [#allocation6], 1
    %876 = vsyncpa [#allocation4], 1

// kernel: tpu_custom_call.1
$region0: #{tpu_custom_call.1}
  #allocation0 [shape = 'u32[]', space=smem, size = 0x4, offset = 0x4, fixed_abs, tag = 'smem constant byte address 0x4 - core index']
  #allocation1 [shape = 'u32[144,128]{1,0:T(1,128)}', space=vmem, size = 0x12000, scoped, tag = 'internal scratch']
  %s0 = inlined_call_operand.hbm [shape: bf16[128,128], index: 0, kind: input, shape index: {}]
  %s1 = inlined_call_operand.hbm [shape: bf16[3,128,128], index: 1, kind: input, shape index: {}]
  %s2 = inlined_call_operand.vmem [shape: f32[3,1,128], index: 2, kind: input, shape index: {}]
  %s3 = inlined_call_operand.hbm [shape: f32[128,128], index: 3, kind: output, shape index: {}]
  %s4 = sld [smem:[#allocation0]]
  $region30: #{tpu_custom_call.1} parent=0
    _
  %s6 = ssub.s32 1, %s4
  %s7 = scalar_select 0, %s6, %s4
  $region1: #{tpu_custom_call.1} parent=0
    #allocation2 [shape = 'u8[32768]{0}', space=vmem, size = 0x8000, scoped, tag = 'input window, operand 0, single buffered']
    #allocation3 [shape = 's32[1]{0}', space=sflag, size = 0x4, scoped, tag = 'scoped memory for tpu_custom_call.1']
    #allocation4 [shape = 's32[1]{0}', space=sflag, size = 0x4, scoped, tag = 'scoped memory for tpu_custom_call.1']
    #allocation5 [shape = 'u8[98304]{0}', space=vmem, size = 0x18000, scoped, tag = 'input window, operand 1, single buffered']
    #allocation6 [shape = 's32[1]{0}', space=sflag, size = 0x4, scoped, tag = 'scoped memory for tpu_custom_call.1']
    #allocation7 [shape = 'u8[65536]{0}', space=vmem, size = 0x10000, scoped, tag = 'output window, operand 0, single buffered']
    %8 = vsyncpa [#allocation3], 0
    %9 = vsyncpa [#allocation6], 0
    %10 = vsyncpa [#allocation4], 0
    // Predicated region
    $region2: #{tpu_custom_call.1} parent=1 // pred_check
      _
    $region3: #{tpu_custom_call.1} parent=1 // pred_check_branch
      %12 = sbr.rel (0) target = $region5
    $region4: #{tpu_custom_call.1} parent=1 // pred_region
      %s14 = ssub.s32 1024, 1024
      %15 = vsyncadd [#allocation3], %s14
      %s16 = sshll.u32 [#allocation2], 4
      %s17 = int_to_ptr.vmem [resolvable:$true] %s16
      %22 = dma.hbm_to_vmem [thread:$0]  %s0, 1024, %s17, [#allocation3], 64, 64, 4
    $region5: #{tpu_custom_call.1} parent=1 // pred_fallthru
      _
    // Predicated region
    $region6: #{tpu_custom_call.1} parent=1 // pred_check
      _
    $region7: #{tpu_custom_call.1} parent=1 // pred_check_branch
      %24 = sbr.rel (0) target = $region9
    $region8: #{tpu_custom_call.1} parent=1 // pred_region
      %s26 = ssub.s32 3072, 3072
      %27 = vsyncadd [#allocation6], %s26
      %s28 = sshll.u32 [#allocation5], 4
      %s29 = int_to_ptr.vmem [resolvable:$true] %s28
      %34 = dma.hbm_to_vmem [thread:$0]  %s1, 3072, %s29, [#allocation6], 64, 64, 4
    $region9: #{tpu_custom_call.1} parent=1 // pred_fallthru
      _
    // Predicated region
    $region10: #{tpu_custom_call.1} parent=1 // pred_check
      _
    $region11: #{tpu_custom_call.1} parent=1 // pred_check_branch
      %36 = sbr.rel (0) target = $region13
    $region12: #{tpu_custom_call.1} parent=1 // pred_region
      _
    $region13: #{tpu_custom_call.1} parent=1 // pred_fallthru
      _
    // Predicated region
    $region14: #{tpu_custom_call.1} parent=1 // pred_check
      _
    $region15: #{tpu_custom_call.1} parent=1 // pred_check_branch
      %38 = sbr.rel (0) target = $region17
    $region16: #{tpu_custom_call.1} parent=1 // pred_region
      %39 = dma.done [#allocation3], 1024
    $region17: #{tpu_custom_call.1} parent=1 // pred_fallthru
      _
    // Predicated region
    $region18: #{tpu_custom_call.1} parent=1 // pred_check
      _
    $region19: #{tpu_custom_call.1} parent=1 // pred_check_branch
      %41 = sbr.rel (0) target = $region21
    $region20: #{tpu_custom_call.1} parent=1 // pred_region
      %42 = dma.done [#allocation6], 3072
    $region21: #{tpu_custom_call.1} parent=1 // pred_fallthru
      _
    %v44 = vld [vmem:[#allocation2] sm:$0xf]
    %v45 = vld [vmem:[#allocation2 + $0x4] sm:$0xf]
    %v46 = vld [vmem:[#allocation2 + $0x8] sm:$0xf]
    %v47 = vld [vmem:[#allocation2 + $0xc] sm:$0xf]
    %v48 = vld [vmem:[#allocation2 + $0x10] sm:$0xf]
    %v49 = vld [vmem:[#allocation2 + $0x14] sm:$0xf]
    %v50 = vld [vmem:[#allocation2 + $0x18] sm:$0xf]
    %v51 = vld [vmem:[#allocation2 + $0x1c] sm:$0xf]
    %v52 = vld [vmem:[#allocation2 + $0x20] sm:$0xf]
    %v53 = vld [vmem:[#allocation2 + $0x24] sm:$0xf]
    %v54 = vld [vmem:[#allocation2 + $0x28] sm:$0xf]
    %v55 = vld [vmem:[#allocation2 + $0x2c] sm:$0xf]
    %v56 = vld [vmem:[#allocation2 + $0x30] sm:$0xf]
    %v57 = vld [vmem:[#allocation2 + $0x34] sm:$0xf]
    %v58 = vld [vmem:[#allocation2 + $0x38] sm:$0xf]
    %v59 = vld [vmem:[#allocation2 + $0x3c] sm:$0xf]
    %v60 = vld [vmem:[#allocation5] sm:$0xf]
    %v61 = vld [vmem:[#allocation5 + $0x4] sm:$0xf]
    %v62 = vld [vmem:[#allocation5 + $0x8] sm:$0xf]
    %v63 = vld [vmem:[#allocation5 + $0xc] sm:$0xf]
    %v64 = vld [vmem:[#allocation5 + $0x10] sm:$0xf]
    %v65 = vld [vmem:[#allocation5 + $0x14] sm:$0xf]
    %v66 = vld [vmem:[#allocation5 + $0x18] sm:$0xf]
    %v67 = vld [vmem:[#allocation5 + $0x1c] sm:$0xf]
    %v68 = vld [vmem:[#allocation5 + $0x20] sm:$0xf]
    %v69 = vld [vmem:[#allocation5 + $0x24] sm:$0xf]
    %v70 = vld [vmem:[#allocation5 + $0x28] sm:$0xf]
    %v71 = vld [vmem:[#allocation5 + $0x2c] sm:$0xf]
    %v72 = vld [vmem:[#allocation5 + $0x30] sm:$0xf]
    %v73 = vld [vmem:[#allocation5 + $0x34] sm:$0xf]
    %v74 = vld [vmem:[#allocation5 + $0x38] sm:$0xf]
    %v75 = vld [vmem:[#allocation5 + $0x3c] sm:$0xf]
    %v76 = vld [vmem:[%s2] sm:$0x1]
    %v78 = vlaneseq
    %v79 = vshrl.u32 %v78, 7
    %v80 = vsub.s32 0, %v79
    %v81 = vrot.slane %v76, %v80
    %v99 = vunpack.c.l.b16 %v44
    %v100 = vunpack.c.l.b16 %v45
    %v101 = vunpack.c.l.b16 %v46
    %v102 = vunpack.c.l.b16 %v47
    %v103 = vunpack.c.l.b16 %v48
    %v104 = vunpack.c.l.b16 %v49
    %v105 = vunpack.c.l.b16 %v50
    %v106 = vunpack.c.l.b16 %v51
    %v107 = vunpack.c.l.b16 %v52
    %v108 = vunpack.c.l.b16 %v53
    %v109 = vunpack.c.l.b16 %v54
    %v110 = vunpack.c.l.b16 %v55
    %v111 = vunpack.c.l.b16 %v56
    %v112 = vunpack.c.l.b16 %v57
    %v113 = vunpack.c.l.b16 %v58
    %v114 = vunpack.c.l.b16 %v59
    %v115 = vpack.c.b16 %v100, %v99
    %v116 = vpack.c.b16 %v102, %v101
    %v117 = vpack.c.b16 %v104, %v103
    %v118 = vpack.c.b16 %v106, %v105
    %v119 = vpack.c.b16 %v108, %v107
    %v120 = vpack.c.b16 %v110, %v109
    %v121 = vpack.c.b16 %v112, %v111
    %v122 = vpack.c.b16 %v114, %v113
    %v147 = vunpack.c.l.b16 %v60
    %v148 = vunpack.c.l.b16 %v61
    %v149 = vunpack.c.l.b16 %v62
    %v150 = vunpack.c.l.b16 %v63
    %v151 = vunpack.c.l.b16 %v64
    %v152 = vunpack.c.l.b16 %v65
    %v153 = vunpack.c.l.b16 %v66
    %v154 = vunpack.c.l.b16 %v67
    %v155 = vunpack.c.l.b16 %v68
    %v156 = vunpack.c.l.b16 %v69
    %v157 = vunpack.c.l.b16 %v70
    %v158 = vunpack.c.l.b16 %v71
    %v159 = vunpack.c.l.b16 %v72
    %v160 = vunpack.c.l.b16 %v73
    %v161 = vunpack.c.l.b16 %v74
    %v162 = vunpack.c.l.b16 %v75
    %v163 = vpack.c.b16 %v148, %v147
    %v164 = vpack.c.b16 %v150, %v149
    %v165 = vpack.c.b16 %v152, %v151
    %v166 = vpack.c.b16 %v154, %v153
    %v167 = vpack.c.b16 %v156, %v155
    %v168 = vpack.c.b16 %v158, %v157
    %v169 = vpack.c.b16 %v160, %v159
    %v170 = vpack.c.b16 %v162, %v161
    %179 = vmatprep.subr.bf16.mxu0 0
    %180 = vmatpush1.bf16.msra.mxu0 %v163
    %181 = vmatprep.subr.bf16.mxu0 0
    %182 = vmatpush1.bf16.msra.mxu0 %v164
    %183 = vmatprep.subr.bf16.mxu0 0
    %184 = vmatpush1.bf16.msra.mxu0 %v165
    %185 = vmatprep.subr.bf16.mxu0 0
    %186 = vmatpush1.bf16.msra.mxu0 %v166
    %187 = vmatprep.subr.bf16.mxu0 0
    %188 = vmatpush1.bf16.msra.mxu0 %v167
    %189 = vmatprep.subr.bf16.mxu0 0
    %190 = vmatpush1.bf16.msra.mxu0 %v168
    %191 = vmatprep.subr.bf16.mxu0 0
    %192 = vmatpush1.bf16.msra.mxu0 %v169
    %193 = vmatprep.subr.bf16.mxu0 0
    %194 = vmatpush1.bf16.msra.mxu0 %v170
    %195 = vmatprep.subr.bf16.mxu0 0
    %196 = vmatpush1.bf16.msra.mxu0 0
    %197 = vmatprep.subr.bf16.mxu0 0
    %198 = vmatpush1.bf16.msra.mxu0 0
    %199 = vmatprep.subr.bf16.mxu0 0
    %200 = vmatpush1.bf16.msra.mxu0 0
    %201 = vmatprep.subr.bf16.mxu0 0
    %202 = vmatpush1.bf16.msra.mxu0 0
    %203 = vmatprep.subr.bf16.mxu0 0
    %204 = vmatpush1.bf16.msra.mxu0 0
    %205 = vmatprep.subr.bf16.mxu0 0
    %206 = vmatpush1.bf16.msra.mxu0 0
    %207 = vmatprep.subr.bf16.mxu0 0
    %208 = vmatpush1.bf16.msra.mxu0 0
    %209 = vmatprep.subr.bf16.mxu0 0
    %210 = vmatpush1.bf16.msra.mxu0 0
    %211 = vmatprep.mubr.bf16.mxu0 0
    %212 = vmatmul.mubr.bf16.gmra.mrb[0].mxu0 %v115
    %v213 = vpop.f32.mrb[0].mxu0
    %v214 = vadd.f32 %v81, %v213
    %v215 = vpop.f32.mrb[0].mxu0
    %v216 = vpop.f32.mrb[0].mxu0
    %v217 = vadd.f32 %v81, %v216
    %v218 = vpop.f32.mrb[0].mxu0
    %219 = vmatprep.mubr.bf16.mxu0 0
    %220 = vmatmul.mubr.bf16.gmra.mrb[0].mxu0 %v116
    %v221 = vpop.f32.mrb[0].mxu0
    %v222 = vadd.f32 %v81, %v221
    %v223 = vpop.f32.mrb[0].mxu0
    %v224 = vpop.f32.mrb[0].mxu0
    %v225 = vadd.f32 %v81, %v224
    %v226 = vpop.f32.mrb[0].mxu0
    %227 = vmatprep.mubr.bf16.mxu0 0
    %228 = vmatmul.mubr.bf16.gmra.mrb[0].mxu0 %v117
    %v229 = vpop.f32.mrb[0].mxu0
    %v230 = vadd.f32 %v81, %v229
    %v231 = vpop.f32.mrb[0].mxu0
    %v232 = vpop.f32.mrb[0].mxu0
    %v233 = vadd.f32 %v81, %v232
    %v234 = vpop.f32.mrb[0].mxu0
    %235 = vmatprep.mubr.bf16.mxu0 0
    %236 = vmatmul.mubr.bf16.gmra.mrb[0].mxu0 %v118
    %v237 = vpop.f32.mrb[0].mxu0
    %v238 = vadd.f32 %v81, %v237
    %v239 = vpop.f32.mrb[0].mxu0
    %v240 = vpop.f32.mrb[0].mxu0
    %v241 = vadd.f32 %v81, %v240
    %v242 = vpop.f32.mrb[0].mxu0
    %243 = vmatprep.mubr.bf16.mxu0 0
    %244 = vmatmul.mubr.bf16.gmra.mrb[0].mxu0 %v119
    %v245 = vpop.f32.mrb[0].mxu0
    %v246 = vadd.f32 %v81, %v245
    %v247 = vpop.f32.mrb[0].mxu0
    %v248 = vpop.f32.mrb[0].mxu0
    %v249 = vadd.f32 %v81, %v248
    %v250 = vpop.f32.mrb[0].mxu0
    %251 = vmatprep.mubr.bf16.mxu0 0
    %252 = vmatmul.mubr.bf16.gmra.mrb[0].mxu0 %v120
    %v253 = vpop.f32.mrb[0].mxu0
    %v254 = vadd.f32 %v81, %v253
    %v255 = vpop.f32.mrb[0].mxu0
    %v256 = vpop.f32.mrb[0].mxu0
    %v257 = vadd.f32 %v81, %v256
    %v258 = vpop.f32.mrb[0].mxu0
    %259 = vmatprep.mubr.bf16.mxu0 0
    %260 = vmatmul.mubr.bf16.gmra.mrb[0].mxu0 %v121
    %v261 = vpop.f32.mrb[0].mxu0
    %v262 = vadd.f32 %v81, %v261
    %v263 = vpop.f32.mrb[0].mxu0
    %v264 = vpop.f32.mrb[0].mxu0
    %v265 = vadd.f32 %v81, %v264
    %v266 = vpop.f32.mrb[0].mxu0
    %267 = vmatprep.mubr.bf16.mxu0 0
    %268 = vmatmul.mubr.bf16.gmra.mrb[0].mxu0 %v122
    %v269 = vpop.f32.mrb[0].mxu0
    %v270 = vadd.f32 %v81, %v269
    %v271 = vpop.f32.mrb[0].mxu0
    %v272 = vpop.f32.mrb[0].mxu0
    %v273 = vadd.f32 %v81, %v272
    %v274 = vpop.f32.mrb[0].mxu0
    %275 = vdwg.mxu0
    %v276 = vmax.f32 %v214, 0.0
    %v277 = vmax.f32 %v217, 0.0
    %v278 = vmax.f32 %v222, 0.0
    %v279 = vmax.f32 %v225, 0.0
    %v280 = vmax.f32 %v230, 0.0
    %v281 = vmax.f32 %v233, 0.0
    %v282 = vmax.f32 %v238, 0.0
    %v283 = vmax.f32 %v241, 0.0
    %v284 = vmax.f32 %v246, 0.0
    %v285 = vmax.f32 %v249, 0.0
    %v286 = vmax.f32 %v254, 0.0
    %v287 = vmax.f32 %v257, 0.0
    %v288 = vmax.f32 %v262, 0.0
    %v289 = vmax.f32 %v265, 0.0
    %v290 = vmax.f32 %v270, 0.0
    %v291 = vmax.f32 %v273, 0.0
    %v292 = vpack.c.bf16 %v277, %v276
    %v293 = vpack.c.bf16 %v279, %v278
    %v294 = vpack.c.bf16 %v281, %v280
    %v295 = vpack.c.bf16 %v283, %v282
    %v296 = vpack.c.bf16 %v285, %v284
    %v297 = vpack.c.bf16 %v287, %v286
    %v298 = vpack.c.bf16 %v289, %v288
    %v299 = vpack.c.bf16 %v291, %v290
    %s300 = scalar_lea.vmem [#allocation5], 64
    %v301 = vld [vmem:[%s300] sm:$0xf]
    %v302 = vld [vmem:[%s300 + $0x4] sm:$0xf]
    %v303 = vld [vmem:[%s300 + $0x8] sm:$0xf]
    %v304 = vld [vmem:[%s300 + $0xc] sm:$0xf]
    %v305 = vld [vmem:[%s300 + $0x10] sm:$0xf]
    %v306 = vld [vmem:[%s300 + $0x14] sm:$0xf]
    %v307 = vld [vmem:[%s300 + $0x18] sm:$0xf]
    %v308 = vld [vmem:[%s300 + $0x1c] sm:$0xf]
    %v309 = vld [vmem:[%s300 + $0x20] sm:$0xf]
    %v310 = vld [vmem:[%s300 + $0x24] sm:$0xf]
    %v311 = vld [vmem:[%s300 + $0x28] sm:$0xf]
    %v312 = vld [vmem:[%s300 + $0x2c] sm:$0xf]
    %v313 = vld [vmem:[%s300 + $0x30] sm:$0xf]
    %v314 = vld [vmem:[%s300 + $0x34] sm:$0xf]
    %v315 = vld [vmem:[%s300 + $0x38] sm:$0xf]
    %v316 = vld [vmem:[%s300 + $0x3c] sm:$0xf]
    %s317 = scalar_lea.vmem %s2, 1
    %v318 = vld [vmem:[%s317] sm:$0x1]
    %v320 = vlaneseq
    %v321 = vshrl.u32 %v320, 7
    %v322 = vsub.s32 0, %v321
    %v323 = vrot.slane %v318, %v322
    %v341 = vunpack.c.l.b16 %v301
    %v342 = vunpack.c.l.b16 %v302
    %v343 = vunpack.c.l.b16 %v303
    %v344 = vunpack.c.l.b16 %v304
    %v345 = vunpack.c.l.b16 %v305
    %v346 = vunpack.c.l.b16 %v306
    %v347 = vunpack.c.l.b16 %v307
    %v348 = vunpack.c.l.b16 %v308
    %v349 = vunpack.c.l.b16 %v309
    %v350 = vunpack.c.l.b16 %v310
    %v351 = vunpack.c.l.b16 %v311
    %v352 = vunpack.c.l.b16 %v312
    %v353 = vunpack.c.l.b16 %v313
    %v354 = vunpack.c.l.b16 %v314
    %v355 = vunpack.c.l.b16 %v315
    %v356 = vunpack.c.l.b16 %v316
    %v357 = vpack.c.b16 %v342, %v341
    %v358 = vpack.c.b16 %v344, %v343
    %v359 = vpack.c.b16 %v346, %v345
    %v360 = vpack.c.b16 %v348, %v347
    %v361 = vpack.c.b16 %v350, %v349
    %v362 = vpack.c.b16 %v352, %v351
    %v363 = vpack.c.b16 %v354, %v353
    %v364 = vpack.c.b16 %v356, %v355
    %373 = vmatprep.subr.bf16.mxu0 0
    %374 = vmatpush1.bf16.msra.mxu0 %v357
    %375 = vmatprep.subr.bf16.mxu0 0
    %376 = vmatpush1.bf16.msra.mxu0 %v358
    %377 = vmatprep.subr.bf16.mxu0 0
    %378 = vmatpush1.bf16.msra.mxu0 %v359
    %379 = vmatprep.subr.bf16.mxu0 0
    %380 = vmatpush1.bf16.msra.mxu0 %v360
    %381 = vmatprep.subr.bf16.mxu0 0
    %382 = vmatpush1.bf16.msra.mxu0 %v361
    %383 = vmatprep.subr.bf16.mxu0 0
    %384 = vmatpush1.bf16.msra.mxu0 %v362
    %385 = vmatprep.subr.bf16.mxu0 0
    %386 = vmatpush1.bf16.msra.mxu0 %v363
    %387 = vmatprep.subr.bf16.mxu0 0
    %388 = vmatpush1.bf16.msra.mxu0 %v364
    %389 = vmatprep.subr.bf16.mxu0 0
    %390 = vmatpush1.bf16.msra.mxu0 0
    %391 = vmatprep.subr.bf16.mxu0 0
    %392 = vmatpush1.bf16.msra.mxu0 0
    %393 = vmatprep.subr.bf16.mxu0 0
    %394 = vmatpush1.bf16.msra.mxu0 0
    %395 = vmatprep.subr.bf16.mxu0 0
    %396 = vmatpush1.bf16.msra.mxu0 0
    %397 = vmatprep.subr.bf16.mxu0 0
    %398 = vmatpush1.bf16.msra.mxu0 0
    %399 = vmatprep.subr.bf16.mxu0 0
    %400 = vmatpush1.bf16.msra.mxu0 0
    %401 = vmatprep.subr.bf16.mxu0 0
    %402 = vmatpush1.bf16.msra.mxu0 0
    %403 = vmatprep.subr.bf16.mxu0 0
    %404 = vmatpush1.bf16.msra.mxu0 0
    %405 = vmatprep.mubr.bf16.mxu0 0
    %406 = vmatmul.mubr.bf16.gmra.mrb[0].mxu0 %v292
    %v407 = vpop.f32.mrb[0].mxu0
    %v408 = vadd.f32 %v323, %v407
    %v409 = vpop.f32.mrb[0].mxu0
    %v410 = vpop.f32.mrb[0].mxu0
    %v411 = vadd.f32 %v323, %v410
    %v412 = vpop.f32.mrb[0].mxu0
    %413 = vmatprep.mubr.bf16.mxu0 0
    %414 = vmatmul.mubr.bf16.gmra.mrb[0].mxu0 %v293
    %v415 = vpop.f32.mrb[0].mxu0
    %v416 = vadd.f32 %v323, %v415
    %v417 = vpop.f32.mrb[0].mxu0
    %v418 = vpop.f32.mrb[0].mxu0
    %v419 = vadd.f32 %v323, %v418
    %v420 = vpop.f32.mrb[0].mxu0
    %421 = vmatprep.mubr.bf16.mxu0 0
    %422 = vmatmul.mubr.bf16.gmra.mrb[0].mxu0 %v294
    %v423 = vpop.f32.mrb[0].mxu0
    %v424 = vadd.f32 %v323, %v423
    %v425 = vpop.f32.mrb[0].mxu0
    %v426 = vpop.f32.mrb[0].mxu0
    %v427 = vadd.f32 %v323, %v426
    %v428 = vpop.f32.mrb[0].mxu0
    %429 = vmatprep.mubr.bf16.mxu0 0
    %430 = vmatmul.mubr.bf16.gmra.mrb[0].mxu0 %v295
    %v431 = vpop.f32.mrb[0].mxu0
    %v432 = vadd.f32 %v323, %v431
    %v433 = vpop.f32.mrb[0].mxu0
    %v434 = vpop.f32.mrb[0].mxu0
    %v435 = vadd.f32 %v323, %v434
    %v436 = vpop.f32.mrb[0].mxu0
    %437 = vmatprep.mubr.bf16.mxu0 0
    %438 = vmatmul.mubr.bf16.gmra.mrb[0].mxu0 %v296
    %v439 = vpop.f32.mrb[0].mxu0
    %v440 = vadd.f32 %v323, %v439
    %v441 = vpop.f32.mrb[0].mxu0
    %v442 = vpop.f32.mrb[0].mxu0
    %v443 = vadd.f32 %v323, %v442
    %v444 = vpop.f32.mrb[0].mxu0
    %445 = vmatprep.mubr.bf16.mxu0 0
    %446 = vmatmul.mubr.bf16.gmra.mrb[0].mxu0 %v297
    %v447 = vpop.f32.mrb[0].mxu0
    %v448 = vadd.f32 %v323, %v447
    %v449 = vpop.f32.mrb[0].mxu0
    %v450 = vpop.f32.mrb[0].mxu0
    %v451 = vadd.f32 %v323, %v450
    %v452 = vpop.f32.mrb[0].mxu0
    %453 = vmatprep.mubr.bf16.mxu0 0
    %454 = vmatmul.mubr.bf16.gmra.mrb[0].mxu0 %v298
    %v455 = vpop.f32.mrb[0].mxu0
    %v456 = vadd.f32 %v323, %v455
    %v457 = vpop.f32.mrb[0].mxu0
    %v458 = vpop.f32.mrb[0].mxu0
    %v459 = vadd.f32 %v323, %v458
    %v460 = vpop.f32.mrb[0].mxu0
    %461 = vmatprep.mubr.bf16.mxu0 0
    %462 = vmatmul.mubr.bf16.gmra.mrb[0].mxu0 %v299
    %v463 = vpop.f32.mrb[0].mxu0
    %v464 = vadd.f32 %v323, %v463
    %v465 = vpop.f32.mrb[0].mxu0
    %v466 = vpop.f32.mrb[0].mxu0
    %v467 = vadd.f32 %v323, %v466
    %v468 = vpop.f32.mrb[0].mxu0
    %469 = vdwg.mxu0
    %v470 = vmax.f32 %v408, 0.0
    %v471 = vmax.f32 %v411, 0.0
    %v472 = vmax.f32 %v416, 0.0
    %v473 = vmax.f32 %v419, 0.0
    %v474 = vmax.f32 %v424, 0.0
    %v475 = vmax.f32 %v427, 0.0
    %v476 = vmax.f32 %v432, 0.0
    %v477 = vmax.f32 %v435, 0.0
    %v478 = vmax.f32 %v440, 0.0
    %v479 = vmax.f32 %v443, 0.0
    %v480 = vmax.f32 %v448, 0.0
    %v481 = vmax.f32 %v451, 0.0
    %v482 = vmax.f32 %v456, 0.0
    %v483 = vmax.f32 %v459, 0.0
    %v484 = vmax.f32 %v464, 0.0
    %v485 = vmax.f32 %v467, 0.0
    %v486 = vpack.c.bf16 %v471, %v470
    %v487 = vpack.c.bf16 %v473, %v472
    %v488 = vpack.c.bf16 %v475, %v474
    %v489 = vpack.c.bf16 %v477, %v476
    %v490 = vpack.c.bf16 %v479, %v478
    %v491 = vpack.c.bf16 %v481, %v480
    %v492 = vpack.c.bf16 %v483, %v482
    %v493 = vpack.c.bf16 %v485, %v484
    %s494 = scalar_lea.vmem [#allocation5], 128
    %v495 = vld [vmem:[%s494] sm:$0xf]
    %v496 = vld [vmem:[%s494 + $0x4] sm:$0xf]
    %v497 = vld [vmem:[%s494 + $0x8] sm:$0xf]
    %v498 = vld [vmem:[%s494 + $0xc] sm:$0xf]
    %v499 = vld [vmem:[%s494 + $0x10] sm:$0xf]
    %v500 = vld [vmem:[%s494 + $0x14] sm:$0xf]
    %v501 = vld [vmem:[%s494 + $0x18] sm:$0xf]
    %v502 = vld [vmem:[%s494 + $0x1c] sm:$0xf]
    %v503 = vld [vmem:[%s494 + $0x20] sm:$0xf]
    %v504 = vld [vmem:[%s494 + $0x24] sm:$0xf]
    %v505 = vld [vmem:[%s494 + $0x28] sm:$0xf]
    %v506 = vld [vmem:[%s494 + $0x2c] sm:$0xf]
    %v507 = vld [vmem:[%s494 + $0x30] sm:$0xf]
    %v508 = vld [vmem:[%s494 + $0x34] sm:$0xf]
    %v509 = vld [vmem:[%s494 + $0x38] sm:$0xf]
    %v510 = vld [vmem:[%s494 + $0x3c] sm:$0xf]
    %s511 = scalar_lea.vmem %s2, 2
    %v512 = vld [vmem:[%s511] sm:$0x1]
    %v514 = vlaneseq
    %v515 = vshrl.u32 %v514, 7
    %v516 = vsub.s32 0, %v515
    %v517 = vrot.slane %v512, %v516
    %v535 = vunpack.c.l.b16 %v495
    %v536 = vunpack.c.l.b16 %v496
    %v537 = vunpack.c.l.b16 %v497
    %v538 = vunpack.c.l.b16 %v498
    %v539 = vunpack.c.l.b16 %v499
    %v540 = vunpack.c.l.b16 %v500
    %v541 = vunpack.c.l.b16 %v501
    %v542 = vunpack.c.l.b16 %v502
    %v543 = vunpack.c.l.b16 %v503
    %v544 = vunpack.c.l.b16 %v504
    %v545 = vunpack.c.l.b16 %v505
    %v546 = vunpack.c.l.b16 %v506
    %v547 = vunpack.c.l.b16 %v507
    %v548 = vunpack.c.l.b16 %v508
    %v549 = vunpack.c.l.b16 %v509
    %v550 = vunpack.c.l.b16 %v510
    %v551 = vpack.c.b16 %v536, %v535
    %v552 = vpack.c.b16 %v538, %v537
    %v553 = vpack.c.b16 %v540, %v539
    %v554 = vpack.c.b16 %v542, %v541
    %v555 = vpack.c.b16 %v544, %v543
    %v556 = vpack.c.b16 %v546, %v545
    %v557 = vpack.c.b16 %v548, %v547
    %v558 = vpack.c.b16 %v550, %v549
    %567 = vmatprep.subr.bf16.mxu0 0
    %568 = vmatpush1.bf16.msra.mxu0 %v551
    %569 = vmatprep.subr.bf16.mxu0 0
    %570 = vmatpush1.bf16.msra.mxu0 %v552
    %571 = vmatprep.subr.bf16.mxu0 0
    %572 = vmatpush1.bf16.msra.mxu0 %v553
    %573 = vmatprep.subr.bf16.mxu0 0
    %574 = vmatpush1.bf16.msra.mxu0 %v554
    %575 = vmatprep.subr.bf16.mxu0 0
    %576 = vmatpush1.bf16.msra.mxu0 %v555
    %577 = vmatprep.subr.bf16.mxu0 0
    %578 = vmatpush1.bf16.msra.mxu0 %v556
    %579 = vmatprep.subr.bf16.mxu0 0
    %580 = vmatpush1.bf16.msra.mxu0 %v557
    %581 = vmatprep.subr.bf16.mxu0 0
    %582 = vmatpush1.bf16.msra.mxu0 %v558
    %583 = vmatprep.subr.bf16.mxu0 0
    %584 = vmatpush1.bf16.msra.mxu0 0
    %585 = vmatprep.subr.bf16.mxu0 0
    %586 = vmatpush1.bf16.msra.mxu0 0
    %587 = vmatprep.subr.bf16.mxu0 0
    %588 = vmatpush1.bf16.msra.mxu0 0
    %589 = vmatprep.subr.bf16.mxu0 0
    %590 = vmatpush1.bf16.msra.mxu0 0
    %591 = vmatprep.subr.bf16.mxu0 0
    %592 = vmatpush1.bf16.msra.mxu0 0
    %593 = vmatprep.subr.bf16.mxu0 0
    %594 = vmatpush1.bf16.msra.mxu0 0
    %595 = vmatprep.subr.bf16.mxu0 0
    %596 = vmatpush1.bf16.msra.mxu0 0
    %597 = vmatprep.subr.bf16.mxu0 0
    %598 = vmatpush1.bf16.msra.mxu0 0
    %599 = vmatprep.mubr.bf16.mxu0 0
    %600 = vmatmul.mubr.bf16.gmra.mrb[0].mxu0 %v486
    %v601 = vpop.f32.mrb[0].mxu0
    %v602 = vadd.f32 %v517, %v601
    %v603 = vpop.f32.mrb[0].mxu0
    %v604 = vpop.f32.mrb[0].mxu0
    %v605 = vadd.f32 %v517, %v604
    %v606 = vpop.f32.mrb[0].mxu0
    %607 = vmatprep.mubr.bf16.mxu0 0
    %608 = vmatmul.mubr.bf16.gmra.mrb[0].mxu0 %v487
    %v609 = vpop.f32.mrb[0].mxu0
    %v610 = vadd.f32 %v517, %v609
    %v611 = vpop.f32.mrb[0].mxu0
    %v612 = vpop.f32.mrb[0].mxu0
    %v613 = vadd.f32 %v517, %v612
    %v614 = vpop.f32.mrb[0].mxu0
    %615 = vmatprep.mubr.bf16.mxu0 0
    %616 = vmatmul.mubr.bf16.gmra.mrb[0].mxu0 %v488
    %v617 = vpop.f32.mrb[0].mxu0
    %v618 = vadd.f32 %v517, %v617
    %v619 = vpop.f32.mrb[0].mxu0
    %v620 = vpop.f32.mrb[0].mxu0
    %v621 = vadd.f32 %v517, %v620
    %v622 = vpop.f32.mrb[0].mxu0
    %623 = vmatprep.mubr.bf16.mxu0 0
    %624 = vmatmul.mubr.bf16.gmra.mrb[0].mxu0 %v489
    %v625 = vpop.f32.mrb[0].mxu0
    %v626 = vadd.f32 %v517, %v625
    %v627 = vpop.f32.mrb[0].mxu0
    %v628 = vpop.f32.mrb[0].mxu0
    %v629 = vadd.f32 %v517, %v628
    %v630 = vpop.f32.mrb[0].mxu0
    %631 = vmatprep.mubr.bf16.mxu0 0
    %632 = vmatmul.mubr.bf16.gmra.mrb[0].mxu0 %v490
    %v633 = vpop.f32.mrb[0].mxu0
    %v634 = vadd.f32 %v517, %v633
    %v635 = vpop.f32.mrb[0].mxu0
    %v636 = vpop.f32.mrb[0].mxu0
    %v637 = vadd.f32 %v517, %v636
    %v638 = vpop.f32.mrb[0].mxu0
    %639 = vmatprep.mubr.bf16.mxu0 0
    %640 = vmatmul.mubr.bf16.gmra.mrb[0].mxu0 %v491
    %v641 = vpop.f32.mrb[0].mxu0
    %v642 = vadd.f32 %v517, %v641
    %v643 = vpop.f32.mrb[0].mxu0
    %v644 = vpop.f32.mrb[0].mxu0
    %v645 = vadd.f32 %v517, %v644
    %v646 = vpop.f32.mrb[0].mxu0
    %647 = vmatprep.mubr.bf16.mxu0 0
    %648 = vmatmul.mubr.bf16.gmra.mrb[0].mxu0 %v492
    %v649 = vpop.f32.mrb[0].mxu0
    %v650 = vadd.f32 %v517, %v649
    %v651 = vpop.f32.mrb[0].mxu0
    %v652 = vpop.f32.mrb[0].mxu0
    %v653 = vadd.f32 %v517, %v652
    %v654 = vpop.f32.mrb[0].mxu0
    %655 = vmatprep.mubr.bf16.mxu0 0
    %656 = vmatmul.mubr.bf16.gmra.mrb[0].mxu0 %v493
    %v657 = vpop.f32.mrb[0].mxu0
    %v658 = vadd.f32 %v517, %v657
    %v659 = vpop.f32.mrb[0].mxu0
    %v660 = vpop.f32.mrb[0].mxu0
    %v661 = vadd.f32 %v517, %v660
    %v662 = vpop.f32.mrb[0].mxu0
    %663 = vdwg.mxu0
    %v664 = vlaneseq
    %v665 = vand.u32 %v664, 127
    %vm666 = vcmp.lt.s32.totalorder %v665, 16
    %v667 = vsel %vm666, %v602, -1e+30
    %v668 = vsel %vm666, %v605, -1e+30
    %v669 = vsel %vm666, %v610, -1e+30
    %v670 = vsel %vm666, %v613, -1e+30
    %v671 = vsel %vm666, %v618, -1e+30
    %v672 = vsel %vm666, %v621, -1e+30
    %v673 = vsel %vm666, %v626, -1e+30
    %v674 = vsel %vm666, %v629, -1e+30
    %v675 = vsel %vm666, %v634, -1e+30
    %v676 = vsel %vm666, %v637, -1e+30
    %v677 = vsel %vm666, %v642, -1e+30
    %v678 = vsel %vm666, %v645, -1e+30
    %v679 = vsel %vm666, %v650, -1e+30
    %v680 = vsel %vm666, %v653, -1e+30
    %v681 = vsel %vm666, %v658, -1e+30
    %v682 = vsel %vm666, %v661, -1e+30
    %683 = vmax.xlane.f32.xlu0 %v667
    %v684 = vpop.xlane.xlu0 %683
    %685 = vmax.xlane.f32.xlu0 %v668
    %v686 = vpop.xlane.xlu0 %685
    %687 = vmax.xlane.f32.xlu0 %v669
    %v688 = vpop.xlane.xlu0 %687
    %689 = vmax.xlane.f32.xlu0 %v670
    %v690 = vpop.xlane.xlu0 %689
    %691 = vmax.xlane.f32.xlu0 %v671
    %v692 = vpop.xlane.xlu0 %691
    %693 = vmax.xlane.f32.xlu0 %v672
    %v694 = vpop.xlane.xlu0 %693
    %695 = vmax.xlane.f32.xlu0 %v673
    %v696 = vpop.xlane.xlu0 %695
    %697 = vmax.xlane.f32.xlu0 %v674
    %v698 = vpop.xlane.xlu0 %697
    %699 = vmax.xlane.f32.xlu0 %v675
    %v700 = vpop.xlane.xlu0 %699
    %701 = vmax.xlane.f32.xlu0 %v676
    %v702 = vpop.xlane.xlu0 %701
    %703 = vmax.xlane.f32.xlu0 %v677
    %v704 = vpop.xlane.xlu0 %703
    %705 = vmax.xlane.f32.xlu0 %v678
    %v706 = vpop.xlane.xlu0 %705
    %707 = vmax.xlane.f32.xlu0 %v679
    %v708 = vpop.xlane.xlu0 %707
    %709 = vmax.xlane.f32.xlu0 %v680
    %v710 = vpop.xlane.xlu0 %709
    %711 = vmax.xlane.f32.xlu0 %v681
    %v712 = vpop.xlane.xlu0 %711
    %713 = vmax.xlane.f32.xlu0 %v682
    %v714 = vpop.xlane.xlu0 %713
    %v715 = vsub.f32 %v667, %v684
    %v716 = vsub.f32 %v668, %v686
    %v717 = vsub.f32 %v669, %v688
    %v718 = vsub.f32 %v670, %v690
    %v719 = vsub.f32 %v671, %v692
    %v720 = vsub.f32 %v672, %v694
    %v721 = vsub.f32 %v673, %v696
    %v722 = vsub.f32 %v674, %v698
    %v723 = vsub.f32 %v675, %v700
    %v724 = vsub.f32 %v676, %v702
    %v725 = vsub.f32 %v677, %v704
    %v726 = vsub.f32 %v678, %v706
    %v727 = vsub.f32 %v679, %v708
    %v728 = vsub.f32 %v680, %v710
    %v729 = vsub.f32 %v681, %v712
    %v730 = vsub.f32 %v682, %v714
    %v731 = vmul.f32 %v715, 1.442695
    %v732 = vpow.pop %v731
    %v733 = vmul.f32 %v716, 1.442695
    %v734 = vpow.pop %v733
    %v735 = vmul.f32 %v717, 1.442695
    %v736 = vpow.pop %v735
    %v737 = vmul.f32 %v718, 1.442695
    %v738 = vpow.pop %v737
    %v739 = vmul.f32 %v719, 1.442695
    %v740 = vpow.pop %v739
    %v741 = vmul.f32 %v720, 1.442695
    %v742 = vpow.pop %v741
    %v743 = vmul.f32 %v721, 1.442695
    %v744 = vpow.pop %v743
    %v745 = vmul.f32 %v722, 1.442695
    %v746 = vpow.pop %v745
    %v747 = vmul.f32 %v723, 1.442695
    %v748 = vpow.pop %v747
    %v749 = vmul.f32 %v724, 1.442695
    %v750 = vpow.pop %v749
    %v751 = vmul.f32 %v725, 1.442695
    %v752 = vpow.pop %v751
    %v753 = vmul.f32 %v726, 1.442695
    %v754 = vpow.pop %v753
    %v755 = vmul.f32 %v727, 1.442695
    %v756 = vpow.pop %v755
    %v757 = vmul.f32 %v728, 1.442695
    %v758 = vpow.pop %v757
    %v759 = vmul.f32 %v729, 1.442695
    %v760 = vpow.pop %v759
    %v761 = vmul.f32 %v730, 1.442695
    %v762 = vpow.pop %v761
    %763 = vadd.xlane.f32.xlu0 %v732
    %v764 = vpop.xlane.xlu0 %763
    %765 = vadd.xlane.f32.xlu0 %v734
    %v766 = vpop.xlane.xlu0 %765
    %767 = vadd.xlane.f32.xlu0 %v736
    %v768 = vpop.xlane.xlu0 %767
    %769 = vadd.xlane.f32.xlu0 %v738
    %v770 = vpop.xlane.xlu0 %769
    %771 = vadd.xlane.f32.xlu0 %v740
    %v772 = vpop.xlane.xlu0 %771
    %773 = vadd.xlane.f32.xlu0 %v742
    %v774 = vpop.xlane.xlu0 %773
    %775 = vadd.xlane.f32.xlu0 %v744
    %v776 = vpop.xlane.xlu0 %775
    %777 = vadd.xlane.f32.xlu0 %v746
    %v778 = vpop.xlane.xlu0 %777
    %779 = vadd.xlane.f32.xlu0 %v748
    %v780 = vpop.xlane.xlu0 %779
    %781 = vadd.xlane.f32.xlu0 %v750
    %v782 = vpop.xlane.xlu0 %781
    %783 = vadd.xlane.f32.xlu0 %v752
    %v784 = vpop.xlane.xlu0 %783
    %785 = vadd.xlane.f32.xlu0 %v754
    %v786 = vpop.xlane.xlu0 %785
    %787 = vadd.xlane.f32.xlu0 %v756
    %v788 = vpop.xlane.xlu0 %787
    %789 = vadd.xlane.f32.xlu0 %v758
    %v790 = vpop.xlane.xlu0 %789
    %791 = vadd.xlane.f32.xlu0 %v760
    %v792 = vpop.xlane.xlu0 %791
    %793 = vadd.xlane.f32.xlu0 %v762
    %v794 = vpop.xlane.xlu0 %793
    %v795 = vlog2.pop %v764
    %v796 = vmul.f32 %v795, 0.6931472
    %v797 = vlog2.pop %v766
    %v798 = vmul.f32 %v797, 0.6931472
    %v799 = vlog2.pop %v768
    %v800 = vmul.f32 %v799, 0.6931472
    %v801 = vlog2.pop %v770
    %v802 = vmul.f32 %v801, 0.6931472
    %v803 = vlog2.pop %v772
    %v804 = vmul.f32 %v803, 0.6931472
    %v805 = vlog2.pop %v774
    %v806 = vmul.f32 %v805, 0.6931472
    %v807 = vlog2.pop %v776
    %v808 = vmul.f32 %v807, 0.6931472
    %v809 = vlog2.pop %v778
    %v810 = vmul.f32 %v809, 0.6931472
    %v811 = vlog2.pop %v780
    %v812 = vmul.f32 %v811, 0.6931472
    %v813 = vlog2.pop %v782
    %v814 = vmul.f32 %v813, 0.6931472
    %v815 = vlog2.pop %v784
    %v816 = vmul.f32 %v815, 0.6931472
    %v817 = vlog2.pop %v786
    %v818 = vmul.f32 %v817, 0.6931472
    %v819 = vlog2.pop %v788
    %v820 = vmul.f32 %v819, 0.6931472
    %v821 = vlog2.pop %v790
    %v822 = vmul.f32 %v821, 0.6931472
    %v823 = vlog2.pop %v792
    %v824 = vmul.f32 %v823, 0.6931472
    %v825 = vlog2.pop %v794
    %v826 = vmul.f32 %v825, 0.6931472
    %v827 = vsub.f32 %v715, %v796
    %v828 = vsub.f32 %v716, %v798
    %v829 = vsub.f32 %v717, %v800
    %v830 = vsub.f32 %v718, %v802
    %v831 = vsub.f32 %v719, %v804
    %v832 = vsub.f32 %v720, %v806
    %v833 = vsub.f32 %v721, %v808
    %v834 = vsub.f32 %v722, %v810
    %v835 = vsub.f32 %v723, %v812
    %v836 = vsub.f32 %v724, %v814
    %v837 = vsub.f32 %v725, %v816
    %v838 = vsub.f32 %v726, %v818
    %v839 = vsub.f32 %v727, %v820
    %v840 = vsub.f32 %v728, %v822
    %v841 = vsub.f32 %v729, %v824
    %v842 = vsub.f32 %v730, %v826
    %843 = vst [vmem:[#allocation7] sm:$0xff] %v827
    %844 = vst [vmem:[#allocation7 + $0x8] sm:$0xff] %v828
    %845 = vst [vmem:[#allocation7 + $0x10] sm:$0xff] %v829
    %846 = vst [vmem:[#allocation7 + $0x18] sm:$0xff] %v830
    %847 = vst [vmem:[#allocation7 + $0x20] sm:$0xff] %v831
    %848 = vst [vmem:[#allocation7 + $0x28] sm:$0xff] %v832
    %849 = vst [vmem:[#allocation7 + $0x30] sm:$0xff] %v833
    %850 = vst [vmem:[#allocation7 + $0x38] sm:$0xff] %v834
    %851 = vst [vmem:[#allocation7 + $0x40] sm:$0xff] %v835
    %852 = vst [vmem:[#allocation7 + $0x48] sm:$0xff] %v836
    %853 = vst [vmem:[#allocation7 + $0x50] sm:$0xff] %v837
    %854 = vst [vmem:[#allocation7 + $0x58] sm:$0xff] %v838
    %855 = vst [vmem:[#allocation7 + $0x60] sm:$0xff] %v839
    %856 = vst [vmem:[#allocation7 + $0x68] sm:$0xff] %v840
    %857 = vst [vmem:[#allocation7 + $0x70] sm:$0xff] %v841
    %858 = vst [vmem:[#allocation7 + $0x78] sm:$0xff] %v842
    // Predicated region
    $region22: #{tpu_custom_call.1} parent=1 // pred_check
      _
    $region23: #{tpu_custom_call.1} parent=1 // pred_check_branch
      %860 = sbr.rel (0) target = $region25
    $region24: #{tpu_custom_call.1} parent=1 // pred_region
      %s862 = ssub.s32 2048, 2048
      %863 = vsyncadd [#allocation4], %s862
      %s864 = sshll.u32 [#allocation7], 4
      %s865 = int_to_ptr.vmem [resolvable:$true] %s864
      %870 = dma.vmem_to_hbm [thread:$0]  %s865, 2048, %s3, [#allocation4], 128, 128, 8
    $region25: #{tpu_custom_call.1} parent=1 // pred_fallthru
      _
    // Predicated region
    $region26: #{tpu_custom_call.1} parent=1 // pred_check
      _
    $region27: #{tpu_custom_call.1} parent=1 // pred_check_branch
      %872 = sbr.rel (0) target = $region29
    $region28: #{tpu_custom_call.1} parent=1 // pred_region
      %873 = dma.done [#allocation4], 2048
    $region29: #{tpu_custom_call.1} parent=1 // pred_fallthru
      _
    %874 = vsyncpa [#allocation3], 1
    %875 = vsyncpa [#allocation6], 1
    %876 = vsyncpa [#allocation4], 1

</llo_original>
